<compile_context>
chip_gen: v7x
topology: tpu7x:2x2x1
jax: 0.10.0
libtpu: 0.0.40
codegen_flags: <defaults>
</compile_context>

<pallas_src>
import functools

import jax
import jax.numpy as jnp
import numpy as np
from jax import lax
from jax.experimental import pallas as pl
from jax.experimental.pallas import tpu as pltpu


def mhsa_kernel(x_ref, w_ref, b_ref, o_ref, *, nbr_heads):
    # x_ref: (B, S, D)   tokens
    # w_ref: (D, 3D)     block-diagonal [Wq | Wk | Wv], already transposed so y = x @ W
    # b_ref: (1, 3D)     [bq | bk | bv]
    # o_ref: (B, S, D)   per-head outputs hstacked along the token dim
    B, S, D = x_ref.shape
    H = nbr_heads
    hd = D // H
    scale = 1.0 / (float(hd) ** 0.5)

    # One fused, lane-dense QKV projection on the MXU (all batches, all heads).
    # TODO(synk): on v6e/v7x cast x2d / w_ref to bfloat16 here (keep f32
    # accumulation via preferred_element_type) if the accuracy budget allows.
    x2d = x_ref[...].reshape(B * S, D)
    qkv = jnp.dot(x2d, w_ref[...], preferred_element_type=jnp.float32) + b_ref[...]
    q = qkv[:, 0 * D:1 * D].reshape(B, S, D)
    k = qkv[:, 1 * D:2 * D].reshape(B, S, D)
    v = qkv[:, 2 * D:3 * D].reshape(B, S, D)

    head_outs = []
    for h in range(H):  # H is small and static: unrolled in trace
        sl = slice(h * hd, (h + 1) * hd)
        qh, kh, vh = q[..., sl], k[..., sl], v[..., sl]

        # Scores: contract head_dim of q and k directly (no materialized k.T),
        # batched over B.  (B, S, S) f32.
        s = lax.dot_general(qh, kh, (((2,), (2,)), ((0,), (0,))),
                            preferred_element_type=jnp.float32) * scale

        # Numerically-stable softmax; normalize AFTER attn @ V so the divide
        # is a single small EUP reciprocal + multiply instead of an (S,S) VALU divide.
        s = s - jnp.max(s, axis=-1, keepdims=True)
        e = jnp.exp(s)
        denom = jnp.sum(e, axis=-1, keepdims=True)                     # (B, S, 1)
        oh = lax.dot_general(e, vh, (((2,), (1,)), ((0,), (0,))),
                             preferred_element_type=jnp.float32)       # (B, S, hd)
        oh = oh * pl.reciprocal(denom, approx=True)
        head_outs.append(oh)

    # hstack over heads -> one lane-dense (B, S, D) store.
    o_ref[...] = jnp.concatenate(head_outs, axis=-1).astype(o_ref.dtype)


def _block_diag_T(W):
    """(H, hd, hd) PyTorch (out, in) weights -> (D, D) block-diagonal of W[h].T."""
    H, hd, _ = W.shape
    D = H * hd
    out = jnp.zeros((D, D), W.dtype)
    for h in range(H):
        out = out.at[h * hd:(h + 1) * hd, h * hd:(h + 1) * hd].set(W[h].T)
    return out


def mhsa_pallas(tokens, Wq, bq, Wk, bk, Wv, bv):
    """tokens: (B, S, D); W*: (H, hd, hd) in PyTorch (out, in) convention; b*: (H, hd)."""
    B, S, D = tokens.shape
    H, hd, _ = Wq.shape
    assert D == H * hd

    # Fused block-diagonal QKV weights: y = x @ Wqkv + bqkv computes all heads'
    # q/k/v at once while keeping each head's mixing restricted to its slice.
    wqkv = jnp.concatenate(
        [_block_diag_T(Wq), _block_diag_T(Wk), _block_diag_T(Wv)], axis=1)      # (D, 3D)
    bqkv = jnp.concatenate(
        [bq.reshape(-1), bk.reshape(-1), bv.reshape(-1)]).reshape(1, 3 * D)     # (1, 3D)

    flops = 2 * (B * S) * D * (3 * D) + 2 * 2 * B * H * S * S * hd
    transcendentals = B * H * S * (S + 1)  # exp on (S,S) per head + reciprocal per row
    bytes_accessed = 4 * (2 * B * S * D + D * 3 * D + 3 * D)

    return pl.pallas_call(
        functools.partial(mhsa_kernel, nbr_heads=H),
        out_shape=jax.ShapeDtypeStruct((B, S, D), tokens.dtype),
        grid=(1,),  # single invocation: whole problem fits VMEM comfortably
        in_specs=[
            pl.BlockSpec((B, S, D), lambda i: (0, 0, 0)),
            pl.BlockSpec((D, 3 * D), lambda i: (0, 0)),
            pl.BlockSpec((1, 3 * D), lambda i: (0, 0)),
        ],
        out_specs=pl.BlockSpec((B, S, D), lambda i: (0, 0, 0)),
        compiler_params=pltpu.CompilerParams(dimension_semantics=("arbitrary",)),
        cost_estimate=pl.CostEstimate(flops=flops,
                                      transcendentals=transcendentals,
                                      bytes_accessed=bytes_accessed),
    )(tokens, wqkv, bqkv)
    # TODO(synk): at realistic S (>=1k) add a KV-tile grid axis with an
    # online-softmax accumulator (flash-attention pattern) instead of the full
    # (S,S) score block, sized for v7x's 64 MiB VMEM.


def mhsa_reference(tokens, Wq, bq, Wk, bk, Wv, bv):
    """Pure-JAX transcription of the PyTorch forward (loops over images and heads)."""
    B, S, D = tokens.shape
    H, hd, _ = Wq.shape
    batch_out = []
    for b in range(B):
        head_out = []
        for h in range(H):
            xp = tokens[b][:, h * hd:(h + 1) * hd]
            q = xp @ Wq[h].T + bq[h]
            k = xp @ Wk[h].T + bk[h]
            v = xp @ Wv[h].T + bv[h]
            attn = jax.nn.softmax((q @ k.T) / (hd ** 0.5), axis=-1)
            head_out.append(attn @ v)
        batch_out.append(jnp.concatenate(head_out, axis=-1))
    return jnp.stack(batch_out, axis=0)


if __name__ == "__main__":
    token_dim = 32
    nbr_heads = 4
    head_dim = token_dim // nbr_heads
    batch = 2
    seq = 8

    key = jax.random.PRNGKey(0)
    k_tok, k_wq, k_bq, k_wk, k_bk, k_wv, k_bv = jax.random.split(key, 7)

    tokens = jax.random.normal(k_tok, (batch, seq, token_dim), dtype=jnp.float32)

    # Deterministic parameter init (nn.Linear(head_dim, head_dim) per head, per Q/K/V).
    bound = 1.0 / (head_dim ** 0.5)
    Wq = jax.random.uniform(k_wq, (nbr_heads, head_dim, head_dim), jnp.float32, -bound, bound)
    bq = jax.random.uniform(k_bq, (nbr_heads, head_dim), jnp.float32, -bound, bound)
    Wk = jax.random.uniform(k_wk, (nbr_heads, head_dim, head_dim), jnp.float32, -bound, bound)
    bk = jax.random.uniform(k_bk, (nbr_heads, head_dim), jnp.float32, -bound, bound)
    Wv = jax.random.uniform(k_wv, (nbr_heads, head_dim, head_dim), jnp.float32, -bound, bound)
    bv = jax.random.uniform(k_bv, (nbr_heads, head_dim), jnp.float32, -bound, bound)

    out = mhsa_pallas(tokens, Wq, bq, Wk, bk, Wv, bv)
    out = jax.block_until_ready(out)

    ref = mhsa_reference(tokens, Wq, bq, Wk, bk, Wv, bv)
    # Tolerance loosened slightly vs f32-exact because the softmax denominator
    # uses the EUP approximate reciprocal (pl.reciprocal(..., approx=True)).
    np.testing.assert_allclose(np.asarray(out), np.asarray(ref), rtol=5e-3, atol=5e-3)

    print("KERNEL_OK")
</pallas_src>

<mosaic_0001>
module attributes {stable_mosaic.version = 11 : i64} {
  func.func @mhsa_kernel(%arg0: i32, %arg1: memref<2x8x32xf32, #tpu.memory_space<vmem>>, %arg2: memref<32x96xf32, #tpu.memory_space<vmem>>, %arg3: memref<1x96xf32, #tpu.memory_space<vmem>>, %arg4: memref<2x8x32xf32, #tpu.memory_space<vmem>>) attributes {dimension_semantics = [#tpu.dimension_semantics<arbitrary>], iteration_bounds = array<i64: 1>, scalar_prefetch = 0 : i64, scratch_operands = 0 : i64, tpu.core_type = #tpu.core_type<tc>, window_params = [{pipeline_mode = #tpu.pipeline_mode<synchronous>, transform_indices = @transform_0, window_bounds = array<i64: 2, 8, 32>}, {pipeline_mode = #tpu.pipeline_mode<synchronous>, transform_indices = @transform_1, window_bounds = array<i64: 32, 96>}, {pipeline_mode = #tpu.pipeline_mode<synchronous>, transform_indices = @transform_2, window_bounds = array<i64: 1, 96>}, {pipeline_mode = #tpu.pipeline_mode<synchronous>, transform_indices = @transform_3, window_bounds = array<i64: 2, 8, 32>}]} {
    %c0 = arith.constant 0 : index
    %c0_0 = arith.constant 0 : index
    %c0_1 = arith.constant 0 : index
    %0 = vector.load %arg1[%c0, %c0_0, %c0_1] : memref<2x8x32xf32, #tpu.memory_space<vmem>>, vector<2x8x32xf32>
    %1 = vector.shape_cast %0 : vector<2x8x32xf32> to vector<16x32xf32>
    %c0_2 = arith.constant 0 : index
    %c0_3 = arith.constant 0 : index
    %2 = vector.load %arg2[%c0_2, %c0_3] : memref<32x96xf32, #tpu.memory_space<vmem>>, vector<32x96xf32>
    %cst = arith.constant dense<0.000000e+00> : vector<16x96xf32>
    %3 = tpu.matmul %1, %2, %cst {dimension_numbers = #tpu.dot_dimension_numbers<[1], [0], [0], [1], [0, 0, 1, 1], [], []>} : vector<16x32xf32>, vector<32x96xf32>, vector<16x96xf32> -> vector<16x96xf32>
    %c0_4 = arith.constant 0 : index
    %c0_5 = arith.constant 0 : index
    %4 = vector.load %arg3[%c0_4, %c0_5] : memref<1x96xf32, #tpu.memory_space<vmem>>, vector<1x96xf32>
    %5 = vector.broadcast %4 : vector<1x96xf32> to vector<16x96xf32>
    %6 = arith.addf %3, %5 : vector<16x96xf32>
    %7 = vector.extract_strided_slice %6 {offsets = [0, 0], sizes = [16, 32], strides = [1, 1]} : vector<16x96xf32> to vector<16x32xf32>
    %8 = vector.shape_cast %7 : vector<16x32xf32> to vector<2x8x32xf32>
    %9 = vector.extract_strided_slice %6 {offsets = [0, 32], sizes = [16, 32], strides = [1, 1]} : vector<16x96xf32> to vector<16x32xf32>
    %10 = vector.shape_cast %9 : vector<16x32xf32> to vector<2x8x32xf32>
    %11 = vector.extract_strided_slice %6 {offsets = [0, 64], sizes = [16, 32], strides = [1, 1]} : vector<16x96xf32> to vector<16x32xf32>
    %12 = vector.shape_cast %11 : vector<16x32xf32> to vector<2x8x32xf32>
    %13 = vector.extract_strided_slice %8 {offsets = [0, 0, 0], sizes = [2, 8, 8], strides = [1, 1, 1]} : vector<2x8x32xf32> to vector<2x8x8xf32>
    %14 = vector.extract_strided_slice %10 {offsets = [0, 0, 0], sizes = [2, 8, 8], strides = [1, 1, 1]} : vector<2x8x32xf32> to vector<2x8x8xf32>
    %15 = vector.extract_strided_slice %12 {offsets = [0, 0, 0], sizes = [2, 8, 8], strides = [1, 1, 1]} : vector<2x8x32xf32> to vector<2x8x8xf32>
    %cst_6 = arith.constant dense<0.000000e+00> : vector<2x8x8xf32>
    %16 = tpu.matmul %13, %14, %cst_6 {dimension_numbers = #tpu.dot_dimension_numbers<[2], [2], [1], [1], [0, 0, 0, 1, 1, 1], [0], [0]>} : vector<2x8x8xf32>, vector<2x8x8xf32>, vector<2x8x8xf32> -> vector<2x8x8xf32>
    %cst_7 = arith.constant 0.353553385 : f32
    %17 = vector.broadcast %cst_7 : f32 to vector<2x8x8xf32>
    %18 = arith.mulf %16, %17 : vector<2x8x8xf32>
    %cst_8 = arith.constant dense<0xFF800000> : vector<2x8xf32>
    %19 = vector.multi_reduction <maximumf>, %18, %cst_8 [2] : vector<2x8x8xf32> to vector<2x8xf32>
    %20 = vector.shape_cast %19 : vector<2x8xf32> to vector<2x8x1xf32>
    %21 = vector.broadcast %20 : vector<2x8x1xf32> to vector<2x8x8xf32>
    %22 = arith.subf %18, %21 : vector<2x8x8xf32>
    %23 = math.exp %22 : vector<2x8x8xf32>
    %cst_9 = arith.constant dense<0.000000e+00> : vector<2x8xf32>
    %24 = vector.multi_reduction <add>, %23, %cst_9 [2] : vector<2x8x8xf32> to vector<2x8xf32>
    %25 = vector.shape_cast %24 : vector<2x8xf32> to vector<2x8x1xf32>
    %cst_10 = arith.constant dense<0.000000e+00> : vector<2x8x8xf32>
    %26 = tpu.matmul %23, %15, %cst_10 {dimension_numbers = #tpu.dot_dimension_numbers<[2], [1], [1], [2], [0, 0, 0, 1, 1, 2], [0], [0]>} : vector<2x8x8xf32>, vector<2x8x8xf32>, vector<2x8x8xf32> -> vector<2x8x8xf32>
    %27 = tpu.reciprocal %25 {approx = true} : vector<2x8x1xf32> -> vector<2x8x1xf32>
    %28 = vector.broadcast %27 : vector<2x8x1xf32> to vector<2x8x8xf32>
    %29 = arith.mulf %26, %28 : vector<2x8x8xf32>
    %30 = vector.extract_strided_slice %8 {offsets = [0, 0, 8], sizes = [2, 8, 8], strides = [1, 1, 1]} : vector<2x8x32xf32> to vector<2x8x8xf32>
    %31 = vector.extract_strided_slice %10 {offsets = [0, 0, 8], sizes = [2, 8, 8], strides = [1, 1, 1]} : vector<2x8x32xf32> to vector<2x8x8xf32>
    %32 = vector.extract_strided_slice %12 {offsets = [0, 0, 8], sizes = [2, 8, 8], strides = [1, 1, 1]} : vector<2x8x32xf32> to vector<2x8x8xf32>
    %cst_11 = arith.constant dense<0.000000e+00> : vector<2x8x8xf32>
    %33 = tpu.matmul %30, %31, %cst_11 {dimension_numbers = #tpu.dot_dimension_numbers<[2], [2], [1], [1], [0, 0, 0, 1, 1, 1], [0], [0]>} : vector<2x8x8xf32>, vector<2x8x8xf32>, vector<2x8x8xf32> -> vector<2x8x8xf32>
    %cst_12 = arith.constant 0.353553385 : f32
    %34 = vector.broadcast %cst_12 : f32 to vector<2x8x8xf32>
    %35 = arith.mulf %33, %34 : vector<2x8x8xf32>
    %cst_13 = arith.constant dense<0xFF800000> : vector<2x8xf32>
    %36 = vector.multi_reduction <maximumf>, %35, %cst_13 [2] : vector<2x8x8xf32> to vector<2x8xf32>
    %37 = vector.shape_cast %36 : vector<2x8xf32> to vector<2x8x1xf32>
    %38 = vector.broadcast %37 : vector<2x8x1xf32> to vector<2x8x8xf32>
    %39 = arith.subf %35, %38 : vector<2x8x8xf32>
    %40 = math.exp %39 : vector<2x8x8xf32>
    %cst_14 = arith.constant dense<0.000000e+00> : vector<2x8xf32>
    %41 = vector.multi_reduction <add>, %40, %cst_14 [2] : vector<2x8x8xf32> to vector<2x8xf32>
    %42 = vector.shape_cast %41 : vector<2x8xf32> to vector<2x8x1xf32>
    %cst_15 = arith.constant dense<0.000000e+00> : vector<2x8x8xf32>
    %43 = tpu.matmul %40, %32, %cst_15 {dimension_numbers = #tpu.dot_dimension_numbers<[2], [1], [1], [2], [0, 0, 0, 1, 1, 2], [0], [0]>} : vector<2x8x8xf32>, vector<2x8x8xf32>, vector<2x8x8xf32> -> vector<2x8x8xf32>
    %44 = tpu.reciprocal %42 {approx = true} : vector<2x8x1xf32> -> vector<2x8x1xf32>
    %45 = vector.broadcast %44 : vector<2x8x1xf32> to vector<2x8x8xf32>
    %46 = arith.mulf %43, %45 : vector<2x8x8xf32>
    %47 = vector.extract_strided_slice %8 {offsets = [0, 0, 16], sizes = [2, 8, 8], strides = [1, 1, 1]} : vector<2x8x32xf32> to vector<2x8x8xf32>
    %48 = vector.extract_strided_slice %10 {offsets = [0, 0, 16], sizes = [2, 8, 8], strides = [1, 1, 1]} : vector<2x8x32xf32> to vector<2x8x8xf32>
    %49 = vector.extract_strided_slice %12 {offsets = [0, 0, 16], sizes = [2, 8, 8], strides = [1, 1, 1]} : vector<2x8x32xf32> to vector<2x8x8xf32>
    %cst_16 = arith.constant dense<0.000000e+00> : vector<2x8x8xf32>
    %50 = tpu.matmul %47, %48, %cst_16 {dimension_numbers = #tpu.dot_dimension_numbers<[2], [2], [1], [1], [0, 0, 0, 1, 1, 1], [0], [0]>} : vector<2x8x8xf32>, vector<2x8x8xf32>, vector<2x8x8xf32> -> vector<2x8x8xf32>
    %cst_17 = arith.constant 0.353553385 : f32
    %51 = vector.broadcast %cst_17 : f32 to vector<2x8x8xf32>
    %52 = arith.mulf %50, %51 : vector<2x8x8xf32>
    %cst_18 = arith.constant dense<0xFF800000> : vector<2x8xf32>
    %53 = vector.multi_reduction <maximumf>, %52, %cst_18 [2] : vector<2x8x8xf32> to vector<2x8xf32>
    %54 = vector.shape_cast %53 : vector<2x8xf32> to vector<2x8x1xf32>
    %55 = vector.broadcast %54 : vector<2x8x1xf32> to vector<2x8x8xf32>
    %56 = arith.subf %52, %55 : vector<2x8x8xf32>
    %57 = math.exp %56 : vector<2x8x8xf32>
    %cst_19 = arith.constant dense<0.000000e+00> : vector<2x8xf32>
    %58 = vector.multi_reduction <add>, %57, %cst_19 [2] : vector<2x8x8xf32> to vector<2x8xf32>
    %59 = vector.shape_cast %58 : vector<2x8xf32> to vector<2x8x1xf32>
    %cst_20 = arith.constant dense<0.000000e+00> : vector<2x8x8xf32>
    %60 = tpu.matmul %57, %49, %cst_20 {dimension_numbers = #tpu.dot_dimension_numbers<[2], [1], [1], [2], [0, 0, 0, 1, 1, 2], [0], [0]>} : vector<2x8x8xf32>, vector<2x8x8xf32>, vector<2x8x8xf32> -> vector<2x8x8xf32>
    %61 = tpu.reciprocal %59 {approx = true} : vector<2x8x1xf32> -> vector<2x8x1xf32>
    %62 = vector.broadcast %61 : vector<2x8x1xf32> to vector<2x8x8xf32>
    %63 = arith.mulf %60, %62 : vector<2x8x8xf32>
    %64 = vector.extract_strided_slice %8 {offsets = [0, 0, 24], sizes = [2, 8, 8], strides = [1, 1, 1]} : vector<2x8x32xf32> to vector<2x8x8xf32>
    %65 = vector.extract_strided_slice %10 {offsets = [0, 0, 24], sizes = [2, 8, 8], strides = [1, 1, 1]} : vector<2x8x32xf32> to vector<2x8x8xf32>
    %66 = vector.extract_strided_slice %12 {offsets = [0, 0, 24], sizes = [2, 8, 8], strides = [1, 1, 1]} : vector<2x8x32xf32> to vector<2x8x8xf32>
    %cst_21 = arith.constant dense<0.000000e+00> : vector<2x8x8xf32>
    %67 = tpu.matmul %64, %65, %cst_21 {dimension_numbers = #tpu.dot_dimension_numbers<[2], [2], [1], [1], [0, 0, 0, 1, 1, 1], [0], [0]>} : vector<2x8x8xf32>, vector<2x8x8xf32>, vector<2x8x8xf32> -> vector<2x8x8xf32>
    %cst_22 = arith.constant 0.353553385 : f32
    %68 = vector.broadcast %cst_22 : f32 to vector<2x8x8xf32>
    %69 = arith.mulf %67, %68 : vector<2x8x8xf32>
    %cst_23 = arith.constant dense<0xFF800000> : vector<2x8xf32>
    %70 = vector.multi_reduction <maximumf>, %69, %cst_23 [2] : vector<2x8x8xf32> to vector<2x8xf32>
    %71 = vector.shape_cast %70 : vector<2x8xf32> to vector<2x8x1xf32>
    %72 = vector.broadcast %71 : vector<2x8x1xf32> to vector<2x8x8xf32>
    %73 = arith.subf %69, %72 : vector<2x8x8xf32>
    %74 = math.exp %73 : vector<2x8x8xf32>
    %cst_24 = arith.constant dense<0.000000e+00> : vector<2x8xf32>
    %75 = vector.multi_reduction <add>, %74, %cst_24 [2] : vector<2x8x8xf32> to vector<2x8xf32>
    %76 = vector.shape_cast %75 : vector<2x8xf32> to vector<2x8x1xf32>
    %cst_25 = arith.constant dense<0.000000e+00> : vector<2x8x8xf32>
    %77 = tpu.matmul %74, %66, %cst_25 {dimension_numbers = #tpu.dot_dimension_numbers<[2], [1], [1], [2], [0, 0, 0, 1, 1, 2], [0], [0]>} : vector<2x8x8xf32>, vector<2x8x8xf32>, vector<2x8x8xf32> -> vector<2x8x8xf32>
    %78 = tpu.reciprocal %76 {approx = true} : vector<2x8x1xf32> -> vector<2x8x1xf32>
    %79 = vector.broadcast %78 : vector<2x8x1xf32> to vector<2x8x8xf32>
    %80 = arith.mulf %77, %79 : vector<2x8x8xf32>
    %81 = tpu.concatenate %29, %46, %63, %80 in 2 : vector<2x8x8xf32>, vector<2x8x8xf32>, vector<2x8x8xf32>, vector<2x8x8xf32> -> vector<2x8x32xf32>
    %c0_26 = arith.constant 0 : index
    %c0_27 = arith.constant 0 : index
    %c0_28 = arith.constant 0 : index
    %82 = vector.load %arg4[%c0_26, %c0_27, %c0_28] : memref<2x8x32xf32, #tpu.memory_space<vmem>>, vector<2x8x32xf32>
    tpu.vector_store %arg4[%c0_26, %c0_27, %c0_28], %81 {strides = array<i32>} : memref<2x8x32xf32, #tpu.memory_space<vmem>>, vector<2x8x32xf32>,
    return
  }
  func.func @transform_0(%arg0: i32) -> (i32, i32, i32) {
    %c0_i32 = arith.constant 0 : i32
    %c0_i32_0 = arith.constant 0 : i32
    %c0_i32_1 = arith.constant 0 : i32
    %c0_i32_2 = arith.constant 0 : i32
    return %c0_i32, %c0_i32_0, %c0_i32_1 : i32, i32, i32
  }
  func.func @transform_1(%arg0: i32) -> (i32, i32) {
    %c0_i32 = arith.constant 0 : i32
    %c0_i32_0 = arith.constant 0 : i32
    %c0_i32_1 = arith.constant 0 : i32
    return %c0_i32, %c0_i32_0 : i32, i32
  }
  func.func @transform_2(%arg0: i32) -> (i32, i32) {
    %c0_i32 = arith.constant 0 : i32
    %c0_i32_0 = arith.constant 0 : i32
    %c0_i32_1 = arith.constant 0 : i32
    return %c0_i32, %c0_i32_0 : i32, i32
  }
  func.func @transform_3(%arg0: i32) -> (i32, i32, i32) {
    %c0_i32 = arith.constant 0 : i32
    %c0_i32_0 = arith.constant 0 : i32
    %c0_i32_1 = arith.constant 0 : i32
    %c0_i32_2 = arith.constant 0 : i32
    return %c0_i32, %c0_i32_0, %c0_i32_1 : i32, i32, i32
  }
}

</mosaic_0001>

<llo_original>
// kernel: tpu_custom_call.1
$region0: #{tpu_custom_call.1}
  #allocation0 [shape = 'u32[]', space=smem, size = 0x4, offset = 0x4, fixed_abs, tag = 'smem constant byte address 0x4 - core index']
  #allocation1 [shape = 'u32[144,128]{1,0:T(1,128)}', space=vmem, size = 0x12000, scoped, tag = 'internal scratch']
  %s0 = inlined_call_operand.hbm [shape: f32[2,8,32], index: 0, kind: input, shape index: {}]
  %s1 = inlined_call_operand.hbm [shape: f32[32,96], index: 1, kind: input, shape index: {}]
  %s2 = inlined_call_operand.vmem [shape: f32[1,96], index: 2, kind: input, shape index: {}]
  %s3 = inlined_call_operand.hbm [shape: f32[2,8,32], index: 3, kind: output, shape index: {}]
  %s4 = sld [smem:[#allocation0]]
  $region30: #{tpu_custom_call.1} parent=0
    _
  %s6 = ssub.s32 1, %s4
  %s7 = scalar_select 0, %s6, %s4
  $region1: #{tpu_custom_call.1} parent=0
    #allocation2 [shape = 'u8[8192]{0}', space=vmem, size = 0x2000, scoped, tag = 'input window, operand 0, single buffered']
    #allocation3 [shape = 's32[1]{0}', space=sflag, size = 0x4, scoped, tag = 'scoped memory for tpu_custom_call.1']
    #allocation4 [shape = 's32[1]{0}', space=sflag, size = 0x4, scoped, tag = 'scoped memory for tpu_custom_call.1']
    #allocation5 [shape = 'u8[16384]{0}', space=vmem, size = 0x4000, scoped, tag = 'input window, operand 1, single buffered']
    #allocation6 [shape = 's32[1]{0}', space=sflag, size = 0x4, scoped, tag = 'scoped memory for tpu_custom_call.1']
    #allocation7 [shape = 'u8[8192]{0}', space=vmem, size = 0x2000, scoped, tag = 'output window, operand 0, single buffered']
    %8 = vsyncpa [#allocation3], 0
    %9 = vsyncpa [#allocation6], 0
    %10 = vsyncpa [#allocation4], 0
    // Predicated region
    $region2: #{tpu_custom_call.1} parent=1 // pred_check
      _
    $region3: #{tpu_custom_call.1} parent=1 // pred_check_branch
      %12 = sbr.rel (0) target = $region5
    $region4: #{tpu_custom_call.1} parent=1 // pred_region
      %s14 = ssub.s32 256, 256
      %15 = vsyncadd [#allocation3], %s14
      %s16 = sshll.u32 [#allocation2], 4
      %s17 = int_to_ptr.vmem [resolvable:$true] %s16
      %22 = dma.hbm_to_vmem [thread:$0]  %s0, 256, %s17, [#allocation3], 128, 128, 8
    $region5: #{tpu_custom_call.1} parent=1 // pred_fallthru
      _
    // Predicated region
    $region6: #{tpu_custom_call.1} parent=1 // pred_check
      _
    $region7: #{tpu_custom_call.1} parent=1 // pred_check_branch
      %24 = sbr.rel (0) target = $region9
    $region8: #{tpu_custom_call.1} parent=1 // pred_region
      %s26 = ssub.s32 512, 512
      %27 = vsyncadd [#allocation6], %s26
      %s28 = sshll.u32 [#allocation5], 4
      %s29 = int_to_ptr.vmem [resolvable:$true] %s28
      %34 = dma.hbm_to_vmem [thread:$0]  %s1, 512, %s29, [#allocation6], 128, 128, 8
    $region9: #{tpu_custom_call.1} parent=1 // pred_fallthru
      _
    // Predicated region
    $region10: #{tpu_custom_call.1} parent=1 // pred_check
      _
    $region11: #{tpu_custom_call.1} parent=1 // pred_check_branch
      %36 = sbr.rel (0) target = $region13
    $region12: #{tpu_custom_call.1} parent=1 // pred_region
      _
    $region13: #{tpu_custom_call.1} parent=1 // pred_fallthru
      _
    // Predicated region
    $region14: #{tpu_custom_call.1} parent=1 // pred_check
      _
    $region15: #{tpu_custom_call.1} parent=1 // pred_check_branch
      %38 = sbr.rel (0) target = $region17
    $region16: #{tpu_custom_call.1} parent=1 // pred_region
      %39 = dma.done [#allocation3], 256
    $region17: #{tpu_custom_call.1} parent=1 // pred_fallthru
      _
    // Predicated region
    $region18: #{tpu_custom_call.1} parent=1 // pred_check
      _
    $region19: #{tpu_custom_call.1} parent=1 // pred_check_branch
      %41 = sbr.rel (0) target = $region21
    $region20: #{tpu_custom_call.1} parent=1 // pred_region
      %42 = dma.done [#allocation6], 512
    $region21: #{tpu_custom_call.1} parent=1 // pred_fallthru
      _
    %v43 = vld [vmem:[#allocation2] sm:$0xff]
    %v44 = vld [vmem:[#allocation2 + $0x8] sm:$0xff]
    %v45 = vld [vmem:[#allocation5] sm:$0xff]
    %v46 = vld [vmem:[#allocation5 + $0x8] sm:$0xff]
    %v47 = vld [vmem:[#allocation5 + $0x10] sm:$0xff]
    %v48 = vld [vmem:[#allocation5 + $0x18] sm:$0xff]
    %v49 = vld [vmem:[%s2] sm:$0x1]
    %v51 = vlaneseq
    %v52 = vshrl.u32 %v51, 7
    %v53 = vsub.s32 0, %v52
    %v54 = vrot.slane %v49, %v53
    %vm56 = vcmask 261120
    %v58 = vsel %vm56, %v43, 0
    %v61 = vsel %vm56, %v44, 0
    %63 = vmatprep.subr.mxu0 0.0
    %64 = vmatpush1.msra.mxu0 %v45
    %65 = vmatprep.subr.mxu0 0.0
    %66 = vmatpush1.msra.mxu0 %v46
    %67 = vmatprep.subr.mxu0 0.0
    %68 = vmatpush1.msra.mxu0 %v47
    %69 = vmatprep.subr.mxu0 0.0
    %70 = vmatpush1.msra.mxu0 %v48
    %71 = vmatprep.subr.mxu0 0.0
    %72 = vmatpush1.msra.mxu0 0.0
    %73 = vmatprep.subr.mxu0 0.0
    %74 = vmatpush1.msra.mxu0 0.0
    %75 = vmatprep.subr.mxu0 0.0
    %76 = vmatpush1.msra.mxu0 0.0
    %77 = vmatprep.subr.mxu0 0.0
    %78 = vmatpush1.msra.mxu0 0.0
    %79 = vmatprep.subr.mxu0 0.0
    %80 = vmatpush1.msra.mxu0 0.0
    %81 = vmatprep.subr.mxu0 0.0
    %82 = vmatpush1.msra.mxu0 0.0
    %83 = vmatprep.subr.mxu0 0.0
    %84 = vmatpush1.msra.mxu0 0.0
    %85 = vmatprep.subr.mxu0 0.0
    %86 = vmatpush1.msra.mxu0 0.0
    %87 = vmatprep.subr.mxu0 0.0
    %88 = vmatpush1.msra.mxu0 0.0
    %89 = vmatprep.subr.mxu0 0.0
    %90 = vmatpush1.msra.mxu0 0.0
    %91 = vmatprep.subr.mxu0 0.0
    %92 = vmatpush1.msra.mxu0 0.0
    %93 = vmatprep.subr.mxu0 0.0
    %94 = vmatpush1.msra.mxu0 0.0
    %95 = vmatprep.subr.mxu0 0.0
    %96 = vmatpush1.msra.mxu0 0.0
    %97 = vmatprep.subr.mxu0 0.0
    %98 = vmatpush1.msra.mxu0 0.0
    %99 = vmatprep.subr.mxu0 0.0
    %100 = vmatpush1.msra.mxu0 0.0
    %101 = vmatprep.subr.mxu0 0.0
    %102 = vmatpush1.msra.mxu0 0.0
    %103 = vmatprep.subr.mxu0 0.0
    %104 = vmatpush1.msra.mxu0 0.0
    %105 = vmatprep.subr.mxu0 0.0
    %106 = vmatpush1.msra.mxu0 0.0
    %107 = vmatprep.subr.mxu0 0.0
    %108 = vmatpush1.msra.mxu0 0.0
    %109 = vmatprep.subr.mxu0 0.0
    %110 = vmatpush1.msra.mxu0 0.0
    %111 = vmatprep.subr.mxu0 0.0
    %112 = vmatpush1.msra.mxu0 0.0
    %113 = vmatprep.subr.mxu0 0.0
    %114 = vmatpush1.msra.mxu0 0.0
    %115 = vmatprep.subr.mxu0 0.0
    %116 = vmatpush1.msra.mxu0 0.0
    %117 = vmatprep.subr.mxu0 0.0
    %118 = vmatpush1.msra.mxu0 0.0
    %119 = vmatprep.subr.mxu0 0.0
    %120 = vmatpush1.msra.mxu0 0.0
    %121 = vmatprep.subr.mxu0 0.0
    %122 = vmatpush1.msra.mxu0 0.0
    %123 = vmatprep.subr.mxu0 0.0
    %124 = vmatpush1.msra.mxu0 0.0
    %125 = vmatprep.subr.mxu0 0.0
    %126 = vmatpush1.msra.mxu0 0.0
    %127 = vmatprep.mubr.f32.mxu0 0.0
    %128 = vmatmul.mubr.f32.gmra.mrb[0].mxu0 %v58
    %v129 = vpop.f32.mrb[0].mxu0
    %v130 = vadd.f32 %v54, %v129
    %v131 = vpop.f32.mrb[0].mxu0
    %132 = vmatprep.mubr.f32.mxu0 0.0
    %133 = vmatmul.mubr.f32.gmra.mrb[0].mxu0 %v61
    %v134 = vpop.f32.mrb[0].mxu0
    %v135 = vadd.f32 %v54, %v134
    %v136 = vpop.f32.mrb[0].mxu0
    %137 = vdwg.mxu0
    %139 = vrot.lane.b32.xlu0 %v130, 96
    %v140 = vpop.permute.xlu0 %139
    %vm141 = vcmask 64512
    %v142 = vsel %vm141, %v130, 0
    %v144 = vsel %vm141, %v140, 0
    %146 = vmatprep.subr.mxu0 0.0
    %147 = vmatpush1.xpose.msra.mxu0 %v144
    %148 = vmatprep.subr.mxu0 0.0
    %149 = vmatpush1.xpose.msra.mxu0 0.0
    %150 = vmatprep.subr.mxu0 0.0
    %151 = vmatpush1.xpose.msra.mxu0 0.0
    %152 = vmatprep.subr.mxu0 0.0
    %153 = vmatpush1.xpose.msra.mxu0 0.0
    %154 = vmatprep.subr.mxu0 0.0
    %155 = vmatpush1.xpose.msra.mxu0 0.0
    %156 = vmatprep.subr.mxu0 0.0
    %157 = vmatpush1.xpose.msra.mxu0 0.0
    %158 = vmatprep.subr.mxu0 0.0
    %159 = vmatpush1.xpose.msra.mxu0 0.0
    %160 = vmatprep.subr.mxu0 0.0
    %161 = vmatpush1.xpose.msra.mxu0 0.0
    %162 = vmatprep.subr.mxu0 0.0
    %163 = vmatpush1.xpose.msra.mxu0 0.0
    %164 = vmatprep.subr.mxu0 0.0
    %165 = vmatpush1.xpose.msra.mxu0 0.0
    %166 = vmatprep.subr.mxu0 0.0
    %167 = vmatpush1.xpose.msra.mxu0 0.0
    %168 = vmatprep.subr.mxu0 0.0
    %169 = vmatpush1.xpose.msra.mxu0 0.0
    %170 = vmatprep.subr.mxu0 0.0
    %171 = vmatpush1.xpose.msra.mxu0 0.0
    %172 = vmatprep.subr.mxu0 0.0
    %173 = vmatpush1.xpose.msra.mxu0 0.0
    %174 = vmatprep.subr.mxu0 0.0
    %175 = vmatpush1.xpose.msra.mxu0 0.0
    %176 = vmatprep.subr.mxu0 0.0
    %177 = vmatpush1.xpose.msra.mxu0 0.0
    %178 = vmatprep.subr.mxu0 0.0
    %179 = vmatpush1.xpose.msra.mxu0 0.0
    %180 = vmatprep.subr.mxu0 0.0
    %181 = vmatpush1.xpose.msra.mxu0 0.0
    %182 = vmatprep.subr.mxu0 0.0
    %183 = vmatpush1.xpose.msra.mxu0 0.0
    %184 = vmatprep.subr.mxu0 0.0
    %185 = vmatpush1.xpose.msra.mxu0 0.0
    %186 = vmatprep.subr.mxu0 0.0
    %187 = vmatpush1.xpose.msra.mxu0 0.0
    %188 = vmatprep.subr.mxu0 0.0
    %189 = vmatpush1.xpose.msra.mxu0 0.0
    %190 = vmatprep.subr.mxu0 0.0
    %191 = vmatpush1.xpose.msra.mxu0 0.0
    %192 = vmatprep.subr.mxu0 0.0
    %193 = vmatpush1.xpose.msra.mxu0 0.0
    %194 = vmatprep.subr.mxu0 0.0
    %195 = vmatpush1.xpose.msra.mxu0 0.0
    %196 = vmatprep.subr.mxu0 0.0
    %197 = vmatpush1.xpose.msra.mxu0 0.0
    %198 = vmatprep.subr.mxu0 0.0
    %199 = vmatpush1.xpose.msra.mxu0 0.0
    %200 = vmatprep.subr.mxu0 0.0
    %201 = vmatpush1.xpose.msra.mxu0 0.0
    %202 = vmatprep.subr.mxu0 0.0
    %203 = vmatpush1.xpose.msra.mxu0 0.0
    %204 = vmatprep.subr.mxu0 0.0
    %205 = vmatpush1.xpose.msra.mxu0 0.0
    %206 = vmatprep.subr.mxu0 0.0
    %207 = vmatpush1.xpose.msra.mxu0 0.0
    %208 = vmatprep.subr.mxu0 0.0
    %209 = vmatpush1.xpose.msra.mxu0 0.0
    %210 = vmatprep.mubr.f32.mxu0 0.0
    %211 = vmatmul.mubr.f32.gmra.mrb[0].mxu0 %v142
    %v212 = vpop.f32.mrb[0].mxu0
    %v213 = vadd.f32 0.0, %v212
    %v214 = vpop.f32.mrb[0].mxu0
    %215 = vdwg.mxu0
    %217 = vrot.lane.b32.xlu0 %v135, 96
    %v218 = vpop.permute.xlu0 %217
    %v219 = vsel %vm141, %v135, 0
    %v221 = vsel %vm141, %v218, 0
    %223 = vmatprep.subr.mxu0 0.0
    %224 = vmatpush1.xpose.msra.mxu0 %v221
    %225 = vmatprep.subr.mxu0 0.0
    %226 = vmatpush1.xpose.msra.mxu0 0.0
    %227 = vmatprep.subr.mxu0 0.0
    %228 = vmatpush1.xpose.msra.mxu0 0.0
    %229 = vmatprep.subr.mxu0 0.0
    %230 = vmatpush1.xpose.msra.mxu0 0.0
    %231 = vmatprep.subr.mxu0 0.0
    %232 = vmatpush1.xpose.msra.mxu0 0.0
    %233 = vmatprep.subr.mxu0 0.0
    %234 = vmatpush1.xpose.msra.mxu0 0.0
    %235 = vmatprep.subr.mxu0 0.0
    %236 = vmatpush1.xpose.msra.mxu0 0.0
    %237 = vmatprep.subr.mxu0 0.0
    %238 = vmatpush1.xpose.msra.mxu0 0.0
    %239 = vmatprep.subr.mxu0 0.0
    %240 = vmatpush1.xpose.msra.mxu0 0.0
    %241 = vmatprep.subr.mxu0 0.0
    %242 = vmatpush1.xpose.msra.mxu0 0.0
    %243 = vmatprep.subr.mxu0 0.0
    %244 = vmatpush1.xpose.msra.mxu0 0.0
    %245 = vmatprep.subr.mxu0 0.0
    %246 = vmatpush1.xpose.msra.mxu0 0.0
    %247 = vmatprep.subr.mxu0 0.0
    %248 = vmatpush1.xpose.msra.mxu0 0.0
    %249 = vmatprep.subr.mxu0 0.0
    %250 = vmatpush1.xpose.msra.mxu0 0.0
    %251 = vmatprep.subr.mxu0 0.0
    %252 = vmatpush1.xpose.msra.mxu0 0.0
    %253 = vmatprep.subr.mxu0 0.0
    %254 = vmatpush1.xpose.msra.mxu0 0.0
    %255 = vmatprep.subr.mxu0 0.0
    %256 = vmatpush1.xpose.msra.mxu0 0.0
    %257 = vmatprep.subr.mxu0 0.0
    %258 = vmatpush1.xpose.msra.mxu0 0.0
    %259 = vmatprep.subr.mxu0 0.0
    %260 = vmatpush1.xpose.msra.mxu0 0.0
    %261 = vmatprep.subr.mxu0 0.0
    %262 = vmatpush1.xpose.msra.mxu0 0.0
    %263 = vmatprep.subr.mxu0 0.0
    %264 = vmatpush1.xpose.msra.mxu0 0.0
    %265 = vmatprep.subr.mxu0 0.0
    %266 = vmatpush1.xpose.msra.mxu0 0.0
    %267 = vmatprep.subr.mxu0 0.0
    %268 = vmatpush1.xpose.msra.mxu0 0.0
    %269 = vmatprep.subr.mxu0 0.0
    %270 = vmatpush1.xpose.msra.mxu0 0.0
    %271 = vmatprep.subr.mxu0 0.0
    %272 = vmatpush1.xpose.msra.mxu0 0.0
    %273 = vmatprep.subr.mxu0 0.0
    %274 = vmatpush1.xpose.msra.mxu0 0.0
    %275 = vmatprep.subr.mxu0 0.0
    %276 = vmatpush1.xpose.msra.mxu0 0.0
    %277 = vmatprep.subr.mxu0 0.0
    %278 = vmatpush1.xpose.msra.mxu0 0.0
    %279 = vmatprep.subr.mxu0 0.0
    %280 = vmatpush1.xpose.msra.mxu0 0.0
    %281 = vmatprep.subr.mxu0 0.0
    %282 = vmatpush1.xpose.msra.mxu0 0.0
    %283 = vmatprep.subr.mxu0 0.0
    %284 = vmatpush1.xpose.msra.mxu0 0.0
    %285 = vmatprep.subr.mxu0 0.0
    %286 = vmatpush1.xpose.msra.mxu0 0.0
    %287 = vmatprep.mubr.f32.mxu0 0.0
    %288 = vmatmul.mubr.f32.gmra.mrb[0].mxu0 %v219
    %v289 = vpop.f32.mrb[0].mxu0
    %v290 = vadd.f32 0.0, %v289
    %v291 = vpop.f32.mrb[0].mxu0
    %292 = vdwg.mxu0
    %v293 = vmul.f32 %v213, 0.35355338
    %v294 = vmul.f32 %v290, 0.35355338
    %v295 = vsel %vm141, %v293, -inf
    %296 = vmax.xlane.f32.xlu0 %v295
    %v297 = vpop.xlane.xlu0 %296
    %v298 = vsel %vm141, %v294, -inf
    %299 = vmax.xlane.f32.xlu0 %v298
    %v300 = vpop.xlane.xlu0 %299
    %v301 = vsub.f32 %v293, %v297
    %v302 = vsub.f32 %v294, %v300
    %v303 = vmul.f32 %v301, 1.442695
    %v304 = vpow.pop %v303
    %v305 = vmul.f32 %v302, 1.442695
    %v306 = vpow.pop %v305
    %v307 = vsel %vm141, %v304, 0.0
    %308 = vadd.xlane.f32.xlu0 %v307
    %v309 = vpop.xlane.xlu0 %308
    %v310 = vsel %vm141, %v306, 0.0
    %311 = vadd.xlane.f32.xlu0 %v310
    %v312 = vpop.xlane.xlu0 %311
    %313 = vrot.lane.b32.xlu0 %v130, 64
    %v314 = vpop.permute.xlu0 %313
    %v317 = vsel %vm141, %v304, 0
    %319 = vmatprep.subr.mxu0 0.0
    %320 = vmatpush1.msra.mxu0 %v314
    %321 = vmatprep.subr.mxu0 0.0
    %322 = vmatpush1.msra.mxu0 0.0
    %323 = vmatprep.subr.mxu0 0.0
    %324 = vmatpush1.msra.mxu0 0.0
    %325 = vmatprep.subr.mxu0 0.0
    %326 = vmatpush1.msra.mxu0 0.0
    %327 = vmatprep.subr.mxu0 0.0
    %328 = vmatpush1.msra.mxu0 0.0
    %329 = vmatprep.subr.mxu0 0.0
    %330 = vmatpush1.msra.mxu0 0.0
    %331 = vmatprep.subr.mxu0 0.0
    %332 = vmatpush1.msra.mxu0 0.0
    %333 = vmatprep.subr.mxu0 0.0
    %334 = vmatpush1.msra.mxu0 0.0
    %335 = vmatprep.subr.mxu0 0.0
    %336 = vmatpush1.msra.mxu0 0.0
    %337 = vmatprep.subr.mxu0 0.0
    %338 = vmatpush1.msra.mxu0 0.0
    %339 = vmatprep.subr.mxu0 0.0
    %340 = vmatpush1.msra.mxu0 0.0
    %341 = vmatprep.subr.mxu0 0.0
    %342 = vmatpush1.msra.mxu0 0.0
    %343 = vmatprep.subr.mxu0 0.0
    %344 = vmatpush1.msra.mxu0 0.0
    %345 = vmatprep.subr.mxu0 0.0
    %346 = vmatpush1.msra.mxu0 0.0
    %347 = vmatprep.subr.mxu0 0.0
    %348 = vmatpush1.msra.mxu0 0.0
    %349 = vmatprep.subr.mxu0 0.0
    %350 = vmatpush1.msra.mxu0 0.0
    %351 = vmatprep.subr.mxu0 0.0
    %352 = vmatpush1.msra.mxu0 0.0
    %353 = vmatprep.subr.mxu0 0.0
    %354 = vmatpush1.msra.mxu0 0.0
    %355 = vmatprep.subr.mxu0 0.0
    %356 = vmatpush1.msra.mxu0 0.0
    %357 = vmatprep.subr.mxu0 0.0
    %358 = vmatpush1.msra.mxu0 0.0
    %359 = vmatprep.subr.mxu0 0.0
    %360 = vmatpush1.msra.mxu0 0.0
    %361 = vmatprep.subr.mxu0 0.0
    %362 = vmatpush1.msra.mxu0 0.0
    %363 = vmatprep.subr.mxu0 0.0
    %364 = vmatpush1.msra.mxu0 0.0
    %365 = vmatprep.subr.mxu0 0.0
    %366 = vmatpush1.msra.mxu0 0.0
    %367 = vmatprep.subr.mxu0 0.0
    %368 = vmatpush1.msra.mxu0 0.0
    %369 = vmatprep.subr.mxu0 0.0
    %370 = vmatpush1.msra.mxu0 0.0
    %371 = vmatprep.subr.mxu0 0.0
    %372 = vmatpush1.msra.mxu0 0.0
    %373 = vmatprep.subr.mxu0 0.0
    %374 = vmatpush1.msra.mxu0 0.0
    %375 = vmatprep.subr.mxu0 0.0
    %376 = vmatpush1.msra.mxu0 0.0
    %377 = vmatprep.subr.mxu0 0.0
    %378 = vmatpush1.msra.mxu0 0.0
    %379 = vmatprep.subr.mxu0 0.0
    %380 = vmatpush1.msra.mxu0 0.0
    %381 = vmatprep.subr.mxu0 0.0
    %382 = vmatpush1.msra.mxu0 0.0
    %383 = vmatprep.mubr.f32.mxu0 0.0
    %384 = vmatmul.mubr.f32.gmra.mrb[0].mxu0 %v317
    %v385 = vpop.f32.mrb[0].mxu0
    %v386 = vadd.f32 0.0, %v385
    %v387 = vpop.f32.mrb[0].mxu0
    %388 = vdwg.mxu0
    %389 = vrot.lane.b32.xlu0 %v135, 64
    %v390 = vpop.permute.xlu0 %389
    %v393 = vsel %vm141, %v306, 0
    %395 = vmatprep.subr.mxu0 0.0
    %396 = vmatpush1.msra.mxu0 %v390
    %397 = vmatprep.subr.mxu0 0.0
    %398 = vmatpush1.msra.mxu0 0.0
    %399 = vmatprep.subr.mxu0 0.0
    %400 = vmatpush1.msra.mxu0 0.0
    %401 = vmatprep.subr.mxu0 0.0
    %402 = vmatpush1.msra.mxu0 0.0
    %403 = vmatprep.subr.mxu0 0.0
    %404 = vmatpush1.msra.mxu0 0.0
    %405 = vmatprep.subr.mxu0 0.0
    %406 = vmatpush1.msra.mxu0 0.0
    %407 = vmatprep.subr.mxu0 0.0
    %408 = vmatpush1.msra.mxu0 0.0
    %409 = vmatprep.subr.mxu0 0.0
    %410 = vmatpush1.msra.mxu0 0.0
    %411 = vmatprep.subr.mxu0 0.0
    %412 = vmatpush1.msra.mxu0 0.0
    %413 = vmatprep.subr.mxu0 0.0
    %414 = vmatpush1.msra.mxu0 0.0
    %415 = vmatprep.subr.mxu0 0.0
    %416 = vmatpush1.msra.mxu0 0.0
    %417 = vmatprep.subr.mxu0 0.0
    %418 = vmatpush1.msra.mxu0 0.0
    %419 = vmatprep.subr.mxu0 0.0
    %420 = vmatpush1.msra.mxu0 0.0
    %421 = vmatprep.subr.mxu0 0.0
    %422 = vmatpush1.msra.mxu0 0.0
    %423 = vmatprep.subr.mxu0 0.0
    %424 = vmatpush1.msra.mxu0 0.0
    %425 = vmatprep.subr.mxu0 0.0
    %426 = vmatpush1.msra.mxu0 0.0
    %427 = vmatprep.subr.mxu0 0.0
    %428 = vmatpush1.msra.mxu0 0.0
    %429 = vmatprep.subr.mxu0 0.0
    %430 = vmatpush1.msra.mxu0 0.0
    %431 = vmatprep.subr.mxu0 0.0
    %432 = vmatpush1.msra.mxu0 0.0
    %433 = vmatprep.subr.mxu0 0.0
    %434 = vmatpush1.msra.mxu0 0.0
    %435 = vmatprep.subr.mxu0 0.0
    %436 = vmatpush1.msra.mxu0 0.0
    %437 = vmatprep.subr.mxu0 0.0
    %438 = vmatpush1.msra.mxu0 0.0
    %439 = vmatprep.subr.mxu0 0.0
    %440 = vmatpush1.msra.mxu0 0.0
    %441 = vmatprep.subr.mxu0 0.0
    %442 = vmatpush1.msra.mxu0 0.0
    %443 = vmatprep.subr.mxu0 0.0
    %444 = vmatpush1.msra.mxu0 0.0
    %445 = vmatprep.subr.mxu0 0.0
    %446 = vmatpush1.msra.mxu0 0.0
    %447 = vmatprep.subr.mxu0 0.0
    %448 = vmatpush1.msra.mxu0 0.0
    %449 = vmatprep.subr.mxu0 0.0
    %450 = vmatpush1.msra.mxu0 0.0
    %451 = vmatprep.subr.mxu0 0.0
    %452 = vmatpush1.msra.mxu0 0.0
    %453 = vmatprep.subr.mxu0 0.0
    %454 = vmatpush1.msra.mxu0 0.0
    %455 = vmatprep.subr.mxu0 0.0
    %456 = vmatpush1.msra.mxu0 0.0
    %457 = vmatprep.subr.mxu0 0.0
    %458 = vmatpush1.msra.mxu0 0.0
    %459 = vmatprep.mubr.f32.mxu0 0.0
    %460 = vmatmul.mubr.f32.gmra.mrb[0].mxu0 %v393
    %v461 = vpop.f32.mrb[0].mxu0
    %v462 = vadd.f32 0.0, %v461
    %v463 = vpop.f32.mrb[0].mxu0
    %464 = vdwg.mxu0
    %v465 = vrcp.pop %v309
    %v466 = vrcp.pop %v312
    %v467 = vmul.f32 %v386, %v465
    %v468 = vmul.f32 %v462, %v466
    %469 = vrot.lane.b32.xlu0 %v130, 120
    %v470 = vpop.permute.xlu0 %469
    %471 = vrot.lane.b32.xlu0 %v130, 88
    %v472 = vpop.permute.xlu0 %471
    %v473 = vsel %vm141, %v470, 0
    %v475 = vsel %vm141, %v472, 0
    %477 = vmatprep.subr.mxu0 0.0
    %478 = vmatpush1.xpose.msra.mxu0 %v475
    %479 = vmatprep.subr.mxu0 0.0
    %480 = vmatpush1.xpose.msra.mxu0 0.0
    %481 = vmatprep.subr.mxu0 0.0
    %482 = vmatpush1.xpose.msra.mxu0 0.0
    %483 = vmatprep.subr.mxu0 0.0
    %484 = vmatpush1.xpose.msra.mxu0 0.0
    %485 = vmatprep.subr.mxu0 0.0
    %486 = vmatpush1.xpose.msra.mxu0 0.0
    %487 = vmatprep.subr.mxu0 0.0
    %488 = vmatpush1.xpose.msra.mxu0 0.0
    %489 = vmatprep.subr.mxu0 0.0
    %490 = vmatpush1.xpose.msra.mxu0 0.0
    %491 = vmatprep.subr.mxu0 0.0
    %492 = vmatpush1.xpose.msra.mxu0 0.0
    %493 = vmatprep.subr.mxu0 0.0
    %494 = vmatpush1.xpose.msra.mxu0 0.0
    %495 = vmatprep.subr.mxu0 0.0
    %496 = vmatpush1.xpose.msra.mxu0 0.0
    %497 = vmatprep.subr.mxu0 0.0
    %498 = vmatpush1.xpose.msra.mxu0 0.0
    %499 = vmatprep.subr.mxu0 0.0
    %500 = vmatpush1.xpose.msra.mxu0 0.0
    %501 = vmatprep.subr.mxu0 0.0
    %502 = vmatpush1.xpose.msra.mxu0 0.0
    %503 = vmatprep.subr.mxu0 0.0
    %504 = vmatpush1.xpose.msra.mxu0 0.0
    %505 = vmatprep.subr.mxu0 0.0
    %506 = vmatpush1.xpose.msra.mxu0 0.0
    %507 = vmatprep.subr.mxu0 0.0
    %508 = vmatpush1.xpose.msra.mxu0 0.0
    %509 = vmatprep.subr.mxu0 0.0
    %510 = vmatpush1.xpose.msra.mxu0 0.0
    %511 = vmatprep.subr.mxu0 0.0
    %512 = vmatpush1.xpose.msra.mxu0 0.0
    %513 = vmatprep.subr.mxu0 0.0
    %514 = vmatpush1.xpose.msra.mxu0 0.0
    %515 = vmatprep.subr.mxu0 0.0
    %516 = vmatpush1.xpose.msra.mxu0 0.0
    %517 = vmatprep.subr.mxu0 0.0
    %518 = vmatpush1.xpose.msra.mxu0 0.0
    %519 = vmatprep.subr.mxu0 0.0
    %520 = vmatpush1.xpose.msra.mxu0 0.0
    %521 = vmatprep.subr.mxu0 0.0
    %522 = vmatpush1.xpose.msra.mxu0 0.0
    %523 = vmatprep.subr.mxu0 0.0
    %524 = vmatpush1.xpose.msra.mxu0 0.0
    %525 = vmatprep.subr.mxu0 0.0
    %526 = vmatpush1.xpose.msra.mxu0 0.0
    %527 = vmatprep.subr.mxu0 0.0
    %528 = vmatpush1.xpose.msra.mxu0 0.0
    %529 = vmatprep.subr.mxu0 0.0
    %530 = vmatpush1.xpose.msra.mxu0 0.0
    %531 = vmatprep.subr.mxu0 0.0
    %532 = vmatpush1.xpose.msra.mxu0 0.0
    %533 = vmatprep.subr.mxu0 0.0
    %534 = vmatpush1.xpose.msra.mxu0 0.0
    %535 = vmatprep.subr.mxu0 0.0
    %536 = vmatpush1.xpose.msra.mxu0 0.0
    %537 = vmatprep.subr.mxu0 0.0
    %538 = vmatpush1.xpose.msra.mxu0 0.0
    %539 = vmatprep.subr.mxu0 0.0
    %540 = vmatpush1.xpose.msra.mxu0 0.0
    %541 = vmatprep.mubr.f32.mxu0 0.0
    %542 = vmatmul.mubr.f32.gmra.mrb[0].mxu0 %v473
    %v543 = vpop.f32.mrb[0].mxu0
    %v544 = vadd.f32 0.0, %v543
    %v545 = vpop.f32.mrb[0].mxu0
    %546 = vdwg.mxu0
    %547 = vrot.lane.b32.xlu0 %v135, 120
    %v548 = vpop.permute.xlu0 %547
    %549 = vrot.lane.b32.xlu0 %v135, 88
    %v550 = vpop.permute.xlu0 %549
    %v551 = vsel %vm141, %v548, 0
    %v553 = vsel %vm141, %v550, 0
    %555 = vmatprep.subr.mxu0 0.0
    %556 = vmatpush1.xpose.msra.mxu0 %v553
    %557 = vmatprep.subr.mxu0 0.0
    %558 = vmatpush1.xpose.msra.mxu0 0.0
    %559 = vmatprep.subr.mxu0 0.0
    %560 = vmatpush1.xpose.msra.mxu0 0.0
    %561 = vmatprep.subr.mxu0 0.0
    %562 = vmatpush1.xpose.msra.mxu0 0.0
    %563 = vmatprep.subr.mxu0 0.0
    %564 = vmatpush1.xpose.msra.mxu0 0.0
    %565 = vmatprep.subr.mxu0 0.0
    %566 = vmatpush1.xpose.msra.mxu0 0.0
    %567 = vmatprep.subr.mxu0 0.0
    %568 = vmatpush1.xpose.msra.mxu0 0.0
    %569 = vmatprep.subr.mxu0 0.0
    %570 = vmatpush1.xpose.msra.mxu0 0.0
    %571 = vmatprep.subr.mxu0 0.0
    %572 = vmatpush1.xpose.msra.mxu0 0.0
    %573 = vmatprep.subr.mxu0 0.0
    %574 = vmatpush1.xpose.msra.mxu0 0.0
    %575 = vmatprep.subr.mxu0 0.0
    %576 = vmatpush1.xpose.msra.mxu0 0.0
    %577 = vmatprep.subr.mxu0 0.0
    %578 = vmatpush1.xpose.msra.mxu0 0.0
    %579 = vmatprep.subr.mxu0 0.0
    %580 = vmatpush1.xpose.msra.mxu0 0.0
    %581 = vmatprep.subr.mxu0 0.0
    %582 = vmatpush1.xpose.msra.mxu0 0.0
    %583 = vmatprep.subr.mxu0 0.0
    %584 = vmatpush1.xpose.msra.mxu0 0.0
    %585 = vmatprep.subr.mxu0 0.0
    %586 = vmatpush1.xpose.msra.mxu0 0.0
    %587 = vmatprep.subr.mxu0 0.0
    %588 = vmatpush1.xpose.msra.mxu0 0.0
    %589 = vmatprep.subr.mxu0 0.0
    %590 = vmatpush1.xpose.msra.mxu0 0.0
    %591 = vmatprep.subr.mxu0 0.0
    %592 = vmatpush1.xpose.msra.mxu0 0.0
    %593 = vmatprep.subr.mxu0 0.0
    %594 = vmatpush1.xpose.msra.mxu0 0.0
    %595 = vmatprep.subr.mxu0 0.0
    %596 = vmatpush1.xpose.msra.mxu0 0.0
    %597 = vmatprep.subr.mxu0 0.0
    %598 = vmatpush1.xpose.msra.mxu0 0.0
    %599 = vmatprep.subr.mxu0 0.0
    %600 = vmatpush1.xpose.msra.mxu0 0.0
    %601 = vmatprep.subr.mxu0 0.0
    %602 = vmatpush1.xpose.msra.mxu0 0.0
    %603 = vmatprep.subr.mxu0 0.0
    %604 = vmatpush1.xpose.msra.mxu0 0.0
    %605 = vmatprep.subr.mxu0 0.0
    %606 = vmatpush1.xpose.msra.mxu0 0.0
    %607 = vmatprep.subr.mxu0 0.0
    %608 = vmatpush1.xpose.msra.mxu0 0.0
    %609 = vmatprep.subr.mxu0 0.0
    %610 = vmatpush1.xpose.msra.mxu0 0.0
    %611 = vmatprep.subr.mxu0 0.0
    %612 = vmatpush1.xpose.msra.mxu0 0.0
    %613 = vmatprep.subr.mxu0 0.0
    %614 = vmatpush1.xpose.msra.mxu0 0.0
    %615 = vmatprep.subr.mxu0 0.0
    %616 = vmatpush1.xpose.msra.mxu0 0.0
    %617 = vmatprep.subr.mxu0 0.0
    %618 = vmatpush1.xpose.msra.mxu0 0.0
    %619 = vmatprep.mubr.f32.mxu0 0.0
    %620 = vmatmul.mubr.f32.gmra.mrb[0].mxu0 %v551
    %v621 = vpop.f32.mrb[0].mxu0
    %v622 = vadd.f32 0.0, %v621
    %v623 = vpop.f32.mrb[0].mxu0
    %624 = vdwg.mxu0
    %v625 = vmul.f32 %v544, 0.35355338
    %v626 = vmul.f32 %v622, 0.35355338
    %v627 = vsel %vm141, %v625, -inf
    %628 = vmax.xlane.f32.xlu0 %v627
    %v629 = vpop.xlane.xlu0 %628
    %v630 = vsel %vm141, %v626, -inf
    %631 = vmax.xlane.f32.xlu0 %v630
    %v632 = vpop.xlane.xlu0 %631
    %v633 = vsub.f32 %v625, %v629
    %v634 = vsub.f32 %v626, %v632
    %v635 = vmul.f32 %v633, 1.442695
    %v636 = vpow.pop %v635
    %v637 = vmul.f32 %v634, 1.442695
    %v638 = vpow.pop %v637
    %v639 = vsel %vm141, %v636, 0.0
    %640 = vadd.xlane.f32.xlu0 %v639
    %v641 = vpop.xlane.xlu0 %640
    %v642 = vsel %vm141, %v638, 0.0
    %643 = vadd.xlane.f32.xlu0 %v642
    %v644 = vpop.xlane.xlu0 %643
    %645 = vrot.lane.b32.xlu0 %v130, 56
    %v646 = vpop.permute.xlu0 %645
    %v649 = vsel %vm141, %v636, 0
    %651 = vmatprep.subr.mxu0 0.0
    %652 = vmatpush1.msra.mxu0 %v646
    %653 = vmatprep.subr.mxu0 0.0
    %654 = vmatpush1.msra.mxu0 0.0
    %655 = vmatprep.subr.mxu0 0.0
    %656 = vmatpush1.msra.mxu0 0.0
    %657 = vmatprep.subr.mxu0 0.0
    %658 = vmatpush1.msra.mxu0 0.0
    %659 = vmatprep.subr.mxu0 0.0
    %660 = vmatpush1.msra.mxu0 0.0
    %661 = vmatprep.subr.mxu0 0.0
    %662 = vmatpush1.msra.mxu0 0.0
    %663 = vmatprep.subr.mxu0 0.0
    %664 = vmatpush1.msra.mxu0 0.0
    %665 = vmatprep.subr.mxu0 0.0
    %666 = vmatpush1.msra.mxu0 0.0
    %667 = vmatprep.subr.mxu0 0.0
    %668 = vmatpush1.msra.mxu0 0.0
    %669 = vmatprep.subr.mxu0 0.0
    %670 = vmatpush1.msra.mxu0 0.0
    %671 = vmatprep.subr.mxu0 0.0
    %672 = vmatpush1.msra.mxu0 0.0
    %673 = vmatprep.subr.mxu0 0.0
    %674 = vmatpush1.msra.mxu0 0.0
    %675 = vmatprep.subr.mxu0 0.0
    %676 = vmatpush1.msra.mxu0 0.0
    %677 = vmatprep.subr.mxu0 0.0
    %678 = vmatpush1.msra.mxu0 0.0
    %679 = vmatprep.subr.mxu0 0.0
    %680 = vmatpush1.msra.mxu0 0.0
    %681 = vmatprep.subr.mxu0 0.0
    %682 = vmatpush1.msra.mxu0 0.0
    %683 = vmatprep.subr.mxu0 0.0
    %684 = vmatpush1.msra.mxu0 0.0
    %685 = vmatprep.subr.mxu0 0.0
    %686 = vmatpush1.msra.mxu0 0.0
    %687 = vmatprep.subr.mxu0 0.0
    %688 = vmatpush1.msra.mxu0 0.0
    %689 = vmatprep.subr.mxu0 0.0
    %690 = vmatpush1.msra.mxu0 0.0
    %691 = vmatprep.subr.mxu0 0.0
    %692 = vmatpush1.msra.mxu0 0.0
    %693 = vmatprep.subr.mxu0 0.0
    %694 = vmatpush1.msra.mxu0 0.0
    %695 = vmatprep.subr.mxu0 0.0
    %696 = vmatpush1.msra.mxu0 0.0
    %697 = vmatprep.subr.mxu0 0.0
    %698 = vmatpush1.msra.mxu0 0.0
    %699 = vmatprep.subr.mxu0 0.0
    %700 = vmatpush1.msra.mxu0 0.0
    %701 = vmatprep.subr.mxu0 0.0
    %702 = vmatpush1.msra.mxu0 0.0
    %703 = vmatprep.subr.mxu0 0.0
    %704 = vmatpush1.msra.mxu0 0.0
    %705 = vmatprep.subr.mxu0 0.0
    %706 = vmatpush1.msra.mxu0 0.0
    %707 = vmatprep.subr.mxu0 0.0
    %708 = vmatpush1.msra.mxu0 0.0
    %709 = vmatprep.subr.mxu0 0.0
    %710 = vmatpush1.msra.mxu0 0.0
    %711 = vmatprep.subr.mxu0 0.0
    %712 = vmatpush1.msra.mxu0 0.0
    %713 = vmatprep.subr.mxu0 0.0
    %714 = vmatpush1.msra.mxu0 0.0
    %715 = vmatprep.mubr.f32.mxu0 0.0
    %716 = vmatmul.mubr.f32.gmra.mrb[0].mxu0 %v649
    %v717 = vpop.f32.mrb[0].mxu0
    %v718 = vadd.f32 0.0, %v717
    %v719 = vpop.f32.mrb[0].mxu0
    %720 = vdwg.mxu0
    %721 = vrot.lane.b32.xlu0 %v135, 56
    %v722 = vpop.permute.xlu0 %721
    %v725 = vsel %vm141, %v638, 0
    %727 = vmatprep.subr.mxu0 0.0
    %728 = vmatpush1.msra.mxu0 %v722
    %729 = vmatprep.subr.mxu0 0.0
    %730 = vmatpush1.msra.mxu0 0.0
    %731 = vmatprep.subr.mxu0 0.0
    %732 = vmatpush1.msra.mxu0 0.0
    %733 = vmatprep.subr.mxu0 0.0
    %734 = vmatpush1.msra.mxu0 0.0
    %735 = vmatprep.subr.mxu0 0.0
    %736 = vmatpush1.msra.mxu0 0.0
    %737 = vmatprep.subr.mxu0 0.0
    %738 = vmatpush1.msra.mxu0 0.0
    %739 = vmatprep.subr.mxu0 0.0
    %740 = vmatpush1.msra.mxu0 0.0
    %741 = vmatprep.subr.mxu0 0.0
    %742 = vmatpush1.msra.mxu0 0.0
    %743 = vmatprep.subr.mxu0 0.0
    %744 = vmatpush1.msra.mxu0 0.0
    %745 = vmatprep.subr.mxu0 0.0
    %746 = vmatpush1.msra.mxu0 0.0
    %747 = vmatprep.subr.mxu0 0.0
    %748 = vmatpush1.msra.mxu0 0.0
    %749 = vmatprep.subr.mxu0 0.0
    %750 = vmatpush1.msra.mxu0 0.0
    %751 = vmatprep.subr.mxu0 0.0
    %752 = vmatpush1.msra.mxu0 0.0
    %753 = vmatprep.subr.mxu0 0.0
    %754 = vmatpush1.msra.mxu0 0.0
    %755 = vmatprep.subr.mxu0 0.0
    %756 = vmatpush1.msra.mxu0 0.0
    %757 = vmatprep.subr.mxu0 0.0
    %758 = vmatpush1.msra.mxu0 0.0
    %759 = vmatprep.subr.mxu0 0.0
    %760 = vmatpush1.msra.mxu0 0.0
    %761 = vmatprep.subr.mxu0 0.0
    %762 = vmatpush1.msra.mxu0 0.0
    %763 = vmatprep.subr.mxu0 0.0
    %764 = vmatpush1.msra.mxu0 0.0
    %765 = vmatprep.subr.mxu0 0.0
    %766 = vmatpush1.msra.mxu0 0.0
    %767 = vmatprep.subr.mxu0 0.0
    %768 = vmatpush1.msra.mxu0 0.0
    %769 = vmatprep.subr.mxu0 0.0
    %770 = vmatpush1.msra.mxu0 0.0
    %771 = vmatprep.subr.mxu0 0.0
    %772 = vmatpush1.msra.mxu0 0.0
    %773 = vmatprep.subr.mxu0 0.0
    %774 = vmatpush1.msra.mxu0 0.0
    %775 = vmatprep.subr.mxu0 0.0
    %776 = vmatpush1.msra.mxu0 0.0
    %777 = vmatprep.subr.mxu0 0.0
    %778 = vmatpush1.msra.mxu0 0.0
    %779 = vmatprep.subr.mxu0 0.0
    %780 = vmatpush1.msra.mxu0 0.0
    %781 = vmatprep.subr.mxu0 0.0
    %782 = vmatpush1.msra.mxu0 0.0
    %783 = vmatprep.subr.mxu0 0.0
    %784 = vmatpush1.msra.mxu0 0.0
    %785 = vmatprep.subr.mxu0 0.0
    %786 = vmatpush1.msra.mxu0 0.0
    %787 = vmatprep.subr.mxu0 0.0
    %788 = vmatpush1.msra.mxu0 0.0
    %789 = vmatprep.subr.mxu0 0.0
    %790 = vmatpush1.msra.mxu0 0.0
    %791 = vmatprep.mubr.f32.mxu0 0.0
    %792 = vmatmul.mubr.f32.gmra.mrb[0].mxu0 %v725
    %v793 = vpop.f32.mrb[0].mxu0
    %v794 = vadd.f32 0.0, %v793
    %v795 = vpop.f32.mrb[0].mxu0
    %796 = vdwg.mxu0
    %v797 = vrcp.pop %v641
    %v798 = vrcp.pop %v644
    %v799 = vmul.f32 %v718, %v797
    %v800 = vmul.f32 %v794, %v798
    %801 = vrot.lane.b32.xlu0 %v130, 112
    %v802 = vpop.permute.xlu0 %801
    %803 = vrot.lane.b32.xlu0 %v130, 80
    %v804 = vpop.permute.xlu0 %803
    %v805 = vsel %vm141, %v802, 0
    %v807 = vsel %vm141, %v804, 0
    %809 = vmatprep.subr.mxu0 0.0
    %810 = vmatpush1.xpose.msra.mxu0 %v807
    %811 = vmatprep.subr.mxu0 0.0
    %812 = vmatpush1.xpose.msra.mxu0 0.0
    %813 = vmatprep.subr.mxu0 0.0
    %814 = vmatpush1.xpose.msra.mxu0 0.0
    %815 = vmatprep.subr.mxu0 0.0
    %816 = vmatpush1.xpose.msra.mxu0 0.0
    %817 = vmatprep.subr.mxu0 0.0
    %818 = vmatpush1.xpose.msra.mxu0 0.0
    %819 = vmatprep.subr.mxu0 0.0
    %820 = vmatpush1.xpose.msra.mxu0 0.0
    %821 = vmatprep.subr.mxu0 0.0
    %822 = vmatpush1.xpose.msra.mxu0 0.0
    %823 = vmatprep.subr.mxu0 0.0
    %824 = vmatpush1.xpose.msra.mxu0 0.0
    %825 = vmatprep.subr.mxu0 0.0
    %826 = vmatpush1.xpose.msra.mxu0 0.0
    %827 = vmatprep.subr.mxu0 0.0
    %828 = vmatpush1.xpose.msra.mxu0 0.0
    %829 = vmatprep.subr.mxu0 0.0
    %830 = vmatpush1.xpose.msra.mxu0 0.0
    %831 = vmatprep.subr.mxu0 0.0
    %832 = vmatpush1.xpose.msra.mxu0 0.0
    %833 = vmatprep.subr.mxu0 0.0
    %834 = vmatpush1.xpose.msra.mxu0 0.0
    %835 = vmatprep.subr.mxu0 0.0
    %836 = vmatpush1.xpose.msra.mxu0 0.0
    %837 = vmatprep.subr.mxu0 0.0
    %838 = vmatpush1.xpose.msra.mxu0 0.0
    %839 = vmatprep.subr.mxu0 0.0
    %840 = vmatpush1.xpose.msra.mxu0 0.0
    %841 = vmatprep.subr.mxu0 0.0
    %842 = vmatpush1.xpose.msra.mxu0 0.0
    %843 = vmatprep.subr.mxu0 0.0
    %844 = vmatpush1.xpose.msra.mxu0 0.0
    %845 = vmatprep.subr.mxu0 0.0
    %846 = vmatpush1.xpose.msra.mxu0 0.0
    %847 = vmatprep.subr.mxu0 0.0
    %848 = vmatpush1.xpose.msra.mxu0 0.0
    %849 = vmatprep.subr.mxu0 0.0
    %850 = vmatpush1.xpose.msra.mxu0 0.0
    %851 = vmatprep.subr.mxu0 0.0
    %852 = vmatpush1.xpose.msra.mxu0 0.0
    %853 = vmatprep.subr.mxu0 0.0
    %854 = vmatpush1.xpose.msra.mxu0 0.0
    %855 = vmatprep.subr.mxu0 0.0
    %856 = vmatpush1.xpose.msra.mxu0 0.0
    %857 = vmatprep.subr.mxu0 0.0
    %858 = vmatpush1.xpose.msra.mxu0 0.0
    %859 = vmatprep.subr.mxu0 0.0
    %860 = vmatpush1.xpose.msra.mxu0 0.0
    %861 = vmatprep.subr.mxu0 0.0
    %862 = vmatpush1.xpose.msra.mxu0 0.0
    %863 = vmatprep.subr.mxu0 0.0
    %864 = vmatpush1.xpose.msra.mxu0 0.0
    %865 = vmatprep.subr.mxu0 0.0
    %866 = vmatpush1.xpose.msra.mxu0 0.0
    %867 = vmatprep.subr.mxu0 0.0
    %868 = vmatpush1.xpose.msra.mxu0 0.0
    %869 = vmatprep.subr.mxu0 0.0
    %870 = vmatpush1.xpose.msra.mxu0 0.0
    %871 = vmatprep.subr.mxu0 0.0
    %872 = vmatpush1.xpose.msra.mxu0 0.0
    %873 = vmatprep.mubr.f32.mxu0 0.0
    %874 = vmatmul.mubr.f32.gmra.mrb[0].mxu0 %v805
    %v875 = vpop.f32.mrb[0].mxu0
    %v876 = vadd.f32 0.0, %v875
    %v877 = vpop.f32.mrb[0].mxu0
    %878 = vdwg.mxu0
    %879 = vrot.lane.b32.xlu0 %v135, 112
    %v880 = vpop.permute.xlu0 %879
    %881 = vrot.lane.b32.xlu0 %v135, 80
    %v882 = vpop.permute.xlu0 %881
    %v883 = vsel %vm141, %v880, 0
    %v885 = vsel %vm141, %v882, 0
    %887 = vmatprep.subr.mxu0 0.0
    %888 = vmatpush1.xpose.msra.mxu0 %v885
    %889 = vmatprep.subr.mxu0 0.0
    %890 = vmatpush1.xpose.msra.mxu0 0.0
    %891 = vmatprep.subr.mxu0 0.0
    %892 = vmatpush1.xpose.msra.mxu0 0.0
    %893 = vmatprep.subr.mxu0 0.0
    %894 = vmatpush1.xpose.msra.mxu0 0.0
    %895 = vmatprep.subr.mxu0 0.0
    %896 = vmatpush1.xpose.msra.mxu0 0.0
    %897 = vmatprep.subr.mxu0 0.0
    %898 = vmatpush1.xpose.msra.mxu0 0.0
    %899 = vmatprep.subr.mxu0 0.0
    %900 = vmatpush1.xpose.msra.mxu0 0.0
    %901 = vmatprep.subr.mxu0 0.0
    %902 = vmatpush1.xpose.msra.mxu0 0.0
    %903 = vmatprep.subr.mxu0 0.0
    %904 = vmatpush1.xpose.msra.mxu0 0.0
    %905 = vmatprep.subr.mxu0 0.0
    %906 = vmatpush1.xpose.msra.mxu0 0.0
    %907 = vmatprep.subr.mxu0 0.0
    %908 = vmatpush1.xpose.msra.mxu0 0.0
    %909 = vmatprep.subr.mxu0 0.0
    %910 = vmatpush1.xpose.msra.mxu0 0.0
    %911 = vmatprep.subr.mxu0 0.0
    %912 = vmatpush1.xpose.msra.mxu0 0.0
    %913 = vmatprep.subr.mxu0 0.0
    %914 = vmatpush1.xpose.msra.mxu0 0.0
    %915 = vmatprep.subr.mxu0 0.0
    %916 = vmatpush1.xpose.msra.mxu0 0.0
    %917 = vmatprep.subr.mxu0 0.0
    %918 = vmatpush1.xpose.msra.mxu0 0.0
    %919 = vmatprep.subr.mxu0 0.0
    %920 = vmatpush1.xpose.msra.mxu0 0.0
    %921 = vmatprep.subr.mxu0 0.0
    %922 = vmatpush1.xpose.msra.mxu0 0.0
    %923 = vmatprep.subr.mxu0 0.0
    %924 = vmatpush1.xpose.msra.mxu0 0.0
    %925 = vmatprep.subr.mxu0 0.0
    %926 = vmatpush1.xpose.msra.mxu0 0.0
    %927 = vmatprep.subr.mxu0 0.0
    %928 = vmatpush1.xpose.msra.mxu0 0.0
    %929 = vmatprep.subr.mxu0 0.0
    %930 = vmatpush1.xpose.msra.mxu0 0.0
    %931 = vmatprep.subr.mxu0 0.0
    %932 = vmatpush1.xpose.msra.mxu0 0.0
    %933 = vmatprep.subr.mxu0 0.0
    %934 = vmatpush1.xpose.msra.mxu0 0.0
    %935 = vmatprep.subr.mxu0 0.0
    %936 = vmatpush1.xpose.msra.mxu0 0.0
    %937 = vmatprep.subr.mxu0 0.0
    %938 = vmatpush1.xpose.msra.mxu0 0.0
    %939 = vmatprep.subr.mxu0 0.0
    %940 = vmatpush1.xpose.msra.mxu0 0.0
    %941 = vmatprep.subr.mxu0 0.0
    %942 = vmatpush1.xpose.msra.mxu0 0.0
    %943 = vmatprep.subr.mxu0 0.0
    %944 = vmatpush1.xpose.msra.mxu0 0.0
    %945 = vmatprep.subr.mxu0 0.0
    %946 = vmatpush1.xpose.msra.mxu0 0.0
    %947 = vmatprep.subr.mxu0 0.0
    %948 = vmatpush1.xpose.msra.mxu0 0.0
    %949 = vmatprep.subr.mxu0 0.0
    %950 = vmatpush1.xpose.msra.mxu0 0.0
    %951 = vmatprep.mubr.f32.mxu0 0.0
    %952 = vmatmul.mubr.f32.gmra.mrb[0].mxu0 %v883
    %v953 = vpop.f32.mrb[0].mxu0
    %v954 = vadd.f32 0.0, %v953
    %v955 = vpop.f32.mrb[0].mxu0
    %956 = vdwg.mxu0
    %v957 = vmul.f32 %v876, 0.35355338
    %v958 = vmul.f32 %v954, 0.35355338
    %v959 = vsel %vm141, %v957, -inf
    %960 = vmax.xlane.f32.xlu0 %v959
    %v961 = vpop.xlane.xlu0 %960
    %v962 = vsel %vm141, %v958, -inf
    %963 = vmax.xlane.f32.xlu0 %v962
    %v964 = vpop.xlane.xlu0 %963
    %v965 = vsub.f32 %v957, %v961
    %v966 = vsub.f32 %v958, %v964
    %v967 = vmul.f32 %v965, 1.442695
    %v968 = vpow.pop %v967
    %v969 = vmul.f32 %v966, 1.442695
    %v970 = vpow.pop %v969
    %v971 = vsel %vm141, %v968, 0.0
    %972 = vadd.xlane.f32.xlu0 %v971
    %v973 = vpop.xlane.xlu0 %972
    %v974 = vsel %vm141, %v970, 0.0
    %975 = vadd.xlane.f32.xlu0 %v974
    %v976 = vpop.xlane.xlu0 %975
    %977 = vrot.lane.b32.xlu0 %v130, 48
    %v978 = vpop.permute.xlu0 %977
    %v981 = vsel %vm141, %v968, 0
    %983 = vmatprep.subr.mxu0 0.0
    %984 = vmatpush1.msra.mxu0 %v978
    %985 = vmatprep.subr.mxu0 0.0
    %986 = vmatpush1.msra.mxu0 0.0
    %987 = vmatprep.subr.mxu0 0.0
    %988 = vmatpush1.msra.mxu0 0.0
    %989 = vmatprep.subr.mxu0 0.0
    %990 = vmatpush1.msra.mxu0 0.0
    %991 = vmatprep.subr.mxu0 0.0
    %992 = vmatpush1.msra.mxu0 0.0
    %993 = vmatprep.subr.mxu0 0.0
    %994 = vmatpush1.msra.mxu0 0.0
    %995 = vmatprep.subr.mxu0 0.0
    %996 = vmatpush1.msra.mxu0 0.0
    %997 = vmatprep.subr.mxu0 0.0
    %998 = vmatpush1.msra.mxu0 0.0
    %999 = vmatprep.subr.mxu0 0.0
    %1000 = vmatpush1.msra.mxu0 0.0
    %1001 = vmatprep.subr.mxu0 0.0
    %1002 = vmatpush1.msra.mxu0 0.0
    %1003 = vmatprep.subr.mxu0 0.0
    %1004 = vmatpush1.msra.mxu0 0.0
    %1005 = vmatprep.subr.mxu0 0.0
    %1006 = vmatpush1.msra.mxu0 0.0
    %1007 = vmatprep.subr.mxu0 0.0
    %1008 = vmatpush1.msra.mxu0 0.0
    %1009 = vmatprep.subr.mxu0 0.0
    %1010 = vmatpush1.msra.mxu0 0.0
    %1011 = vmatprep.subr.mxu0 0.0
    %1012 = vmatpush1.msra.mxu0 0.0
    %1013 = vmatprep.subr.mxu0 0.0
    %1014 = vmatpush1.msra.mxu0 0.0
    %1015 = vmatprep.subr.mxu0 0.0
    %1016 = vmatpush1.msra.mxu0 0.0
    %1017 = vmatprep.subr.mxu0 0.0
    %1018 = vmatpush1.msra.mxu0 0.0
    %1019 = vmatprep.subr.mxu0 0.0
    %1020 = vmatpush1.msra.mxu0 0.0
    %1021 = vmatprep.subr.mxu0 0.0
    %1022 = vmatpush1.msra.mxu0 0.0
    %1023 = vmatprep.subr.mxu0 0.0
    %1024 = vmatpush1.msra.mxu0 0.0
    %1025 = vmatprep.subr.mxu0 0.0
    %1026 = vmatpush1.msra.mxu0 0.0
    %1027 = vmatprep.subr.mxu0 0.0
    %1028 = vmatpush1.msra.mxu0 0.0
    %1029 = vmatprep.subr.mxu0 0.0
    %1030 = vmatpush1.msra.mxu0 0.0
    %1031 = vmatprep.subr.mxu0 0.0
    %1032 = vmatpush1.msra.mxu0 0.0
    %1033 = vmatprep.subr.mxu0 0.0
    %1034 = vmatpush1.msra.mxu0 0.0
    %1035 = vmatprep.subr.mxu0 0.0
    %1036 = vmatpush1.msra.mxu0 0.0
    %1037 = vmatprep.subr.mxu0 0.0
    %1038 = vmatpush1.msra.mxu0 0.0
    %1039 = vmatprep.subr.mxu0 0.0
    %1040 = vmatpush1.msra.mxu0 0.0
    %1041 = vmatprep.subr.mxu0 0.0
    %1042 = vmatpush1.msra.mxu0 0.0
    %1043 = vmatprep.subr.mxu0 0.0
    %1044 = vmatpush1.msra.mxu0 0.0
    %1045 = vmatprep.subr.mxu0 0.0
    %1046 = vmatpush1.msra.mxu0 0.0
    %1047 = vmatprep.mubr.f32.mxu0 0.0
    %1048 = vmatmul.mubr.f32.gmra.mrb[0].mxu0 %v981
    %v1049 = vpop.f32.mrb[0].mxu0
    %v1050 = vadd.f32 0.0, %v1049
    %v1051 = vpop.f32.mrb[0].mxu0
    %1052 = vdwg.mxu0
    %1053 = vrot.lane.b32.xlu0 %v135, 48
    %v1054 = vpop.permute.xlu0 %1053
    %v1057 = vsel %vm141, %v970, 0
    %1059 = vmatprep.subr.mxu0 0.0
    %1060 = vmatpush1.msra.mxu0 %v1054
    %1061 = vmatprep.subr.mxu0 0.0
    %1062 = vmatpush1.msra.mxu0 0.0
    %1063 = vmatprep.subr.mxu0 0.0
    %1064 = vmatpush1.msra.mxu0 0.0
    %1065 = vmatprep.subr.mxu0 0.0
    %1066 = vmatpush1.msra.mxu0 0.0
    %1067 = vmatprep.subr.mxu0 0.0
    %1068 = vmatpush1.msra.mxu0 0.0
    %1069 = vmatprep.subr.mxu0 0.0
    %1070 = vmatpush1.msra.mxu0 0.0
    %1071 = vmatprep.subr.mxu0 0.0
    %1072 = vmatpush1.msra.mxu0 0.0
    %1073 = vmatprep.subr.mxu0 0.0
    %1074 = vmatpush1.msra.mxu0 0.0
    %1075 = vmatprep.subr.mxu0 0.0
    %1076 = vmatpush1.msra.mxu0 0.0
    %1077 = vmatprep.subr.mxu0 0.0
    %1078 = vmatpush1.msra.mxu0 0.0
    %1079 = vmatprep.subr.mxu0 0.0
    %1080 = vmatpush1.msra.mxu0 0.0
    %1081 = vmatprep.subr.mxu0 0.0
    %1082 = vmatpush1.msra.mxu0 0.0
    %1083 = vmatprep.subr.mxu0 0.0
    %1084 = vmatpush1.msra.mxu0 0.0
    %1085 = vmatprep.subr.mxu0 0.0
    %1086 = vmatpush1.msra.mxu0 0.0
    %1087 = vmatprep.subr.mxu0 0.0
    %1088 = vmatpush1.msra.mxu0 0.0
    %1089 = vmatprep.subr.mxu0 0.0
    %1090 = vmatpush1.msra.mxu0 0.0
    %1091 = vmatprep.subr.mxu0 0.0
    %1092 = vmatpush1.msra.mxu0 0.0
    %1093 = vmatprep.subr.mxu0 0.0
    %1094 = vmatpush1.msra.mxu0 0.0
    %1095 = vmatprep.subr.mxu0 0.0
    %1096 = vmatpush1.msra.mxu0 0.0
    %1097 = vmatprep.subr.mxu0 0.0
    %1098 = vmatpush1.msra.mxu0 0.0
    %1099 = vmatprep.subr.mxu0 0.0
    %1100 = vmatpush1.msra.mxu0 0.0
    %1101 = vmatprep.subr.mxu0 0.0
    %1102 = vmatpush1.msra.mxu0 0.0
    %1103 = vmatprep.subr.mxu0 0.0
    %1104 = vmatpush1.msra.mxu0 0.0
    %1105 = vmatprep.subr.mxu0 0.0
    %1106 = vmatpush1.msra.mxu0 0.0
    %1107 = vmatprep.subr.mxu0 0.0
    %1108 = vmatpush1.msra.mxu0 0.0
    %1109 = vmatprep.subr.mxu0 0.0
    %1110 = vmatpush1.msra.mxu0 0.0
    %1111 = vmatprep.subr.mxu0 0.0
    %1112 = vmatpush1.msra.mxu0 0.0
    %1113 = vmatprep.subr.mxu0 0.0
    %1114 = vmatpush1.msra.mxu0 0.0
    %1115 = vmatprep.subr.mxu0 0.0
    %1116 = vmatpush1.msra.mxu0 0.0
    %1117 = vmatprep.subr.mxu0 0.0
    %1118 = vmatpush1.msra.mxu0 0.0
    %1119 = vmatprep.subr.mxu0 0.0
    %1120 = vmatpush1.msra.mxu0 0.0
    %1121 = vmatprep.subr.mxu0 0.0
    %1122 = vmatpush1.msra.mxu0 0.0
    %1123 = vmatprep.mubr.f32.mxu0 0.0
    %1124 = vmatmul.mubr.f32.gmra.mrb[0].mxu0 %v1057
    %v1125 = vpop.f32.mrb[0].mxu0
    %v1126 = vadd.f32 0.0, %v1125
    %v1127 = vpop.f32.mrb[0].mxu0
    %1128 = vdwg.mxu0
    %v1129 = vrcp.pop %v973
    %v1130 = vrcp.pop %v976
    %v1131 = vmul.f32 %v1050, %v1129
    %v1132 = vmul.f32 %v1126, %v1130
    %1133 = vrot.lane.b32.xlu0 %v130, 104
    %v1134 = vpop.permute.xlu0 %1133
    %1135 = vrot.lane.b32.xlu0 %v130, 72
    %v1136 = vpop.permute.xlu0 %1135
    %v1137 = vsel %vm141, %v1134, 0
    %v1139 = vsel %vm141, %v1136, 0
    %1141 = vmatprep.subr.mxu0 0.0
    %1142 = vmatpush1.xpose.msra.mxu0 %v1139
    %1143 = vmatprep.subr.mxu0 0.0
    %1144 = vmatpush1.xpose.msra.mxu0 0.0
    %1145 = vmatprep.subr.mxu0 0.0
    %1146 = vmatpush1.xpose.msra.mxu0 0.0
    %1147 = vmatprep.subr.mxu0 0.0
    %1148 = vmatpush1.xpose.msra.mxu0 0.0
    %1149 = vmatprep.subr.mxu0 0.0
    %1150 = vmatpush1.xpose.msra.mxu0 0.0
    %1151 = vmatprep.subr.mxu0 0.0
    %1152 = vmatpush1.xpose.msra.mxu0 0.0
    %1153 = vmatprep.subr.mxu0 0.0
    %1154 = vmatpush1.xpose.msra.mxu0 0.0
    %1155 = vmatprep.subr.mxu0 0.0
    %1156 = vmatpush1.xpose.msra.mxu0 0.0
    %1157 = vmatprep.subr.mxu0 0.0
    %1158 = vmatpush1.xpose.msra.mxu0 0.0
    %1159 = vmatprep.subr.mxu0 0.0
    %1160 = vmatpush1.xpose.msra.mxu0 0.0
    %1161 = vmatprep.subr.mxu0 0.0
    %1162 = vmatpush1.xpose.msra.mxu0 0.0
    %1163 = vmatprep.subr.mxu0 0.0
    %1164 = vmatpush1.xpose.msra.mxu0 0.0
    %1165 = vmatprep.subr.mxu0 0.0
    %1166 = vmatpush1.xpose.msra.mxu0 0.0
    %1167 = vmatprep.subr.mxu0 0.0
    %1168 = vmatpush1.xpose.msra.mxu0 0.0
    %1169 = vmatprep.subr.mxu0 0.0
    %1170 = vmatpush1.xpose.msra.mxu0 0.0
    %1171 = vmatprep.subr.mxu0 0.0
    %1172 = vmatpush1.xpose.msra.mxu0 0.0
    %1173 = vmatprep.subr.mxu0 0.0
    %1174 = vmatpush1.xpose.msra.mxu0 0.0
    %1175 = vmatprep.subr.mxu0 0.0
    %1176 = vmatpush1.xpose.msra.mxu0 0.0
    %1177 = vmatprep.subr.mxu0 0.0
    %1178 = vmatpush1.xpose.msra.mxu0 0.0
    %1179 = vmatprep.subr.mxu0 0.0
    %1180 = vmatpush1.xpose.msra.mxu0 0.0
    %1181 = vmatprep.subr.mxu0 0.0
    %1182 = vmatpush1.xpose.msra.mxu0 0.0
    %1183 = vmatprep.subr.mxu0 0.0
    %1184 = vmatpush1.xpose.msra.mxu0 0.0
    %1185 = vmatprep.subr.mxu0 0.0
    %1186 = vmatpush1.xpose.msra.mxu0 0.0
    %1187 = vmatprep.subr.mxu0 0.0
    %1188 = vmatpush1.xpose.msra.mxu0 0.0
    %1189 = vmatprep.subr.mxu0 0.0
    %1190 = vmatpush1.xpose.msra.mxu0 0.0
    %1191 = vmatprep.subr.mxu0 0.0
    %1192 = vmatpush1.xpose.msra.mxu0 0.0
    %1193 = vmatprep.subr.mxu0 0.0
    %1194 = vmatpush1.xpose.msra.mxu0 0.0
    %1195 = vmatprep.subr.mxu0 0.0
    %1196 = vmatpush1.xpose.msra.mxu0 0.0
    %1197 = vmatprep.subr.mxu0 0.0
    %1198 = vmatpush1.xpose.msra.mxu0 0.0
    %1199 = vmatprep.subr.mxu0 0.0
    %1200 = vmatpush1.xpose.msra.mxu0 0.0
    %1201 = vmatprep.subr.mxu0 0.0
    %1202 = vmatpush1.xpose.msra.mxu0 0.0
    %1203 = vmatprep.subr.mxu0 0.0
    %1204 = vmatpush1.xpose.msra.mxu0 0.0
    %1205 = vmatprep.mubr.f32.mxu0 0.0
    %1206 = vmatmul.mubr.f32.gmra.mrb[0].mxu0 %v1137
    %v1207 = vpop.f32.mrb[0].mxu0
    %v1208 = vadd.f32 0.0, %v1207
    %v1209 = vpop.f32.mrb[0].mxu0
    %1210 = vdwg.mxu0
    %1211 = vrot.lane.b32.xlu0 %v135, 104
    %v1212 = vpop.permute.xlu0 %1211
    %1213 = vrot.lane.b32.xlu0 %v135, 72
    %v1214 = vpop.permute.xlu0 %1213
    %v1215 = vsel %vm141, %v1212, 0
    %v1217 = vsel %vm141, %v1214, 0
    %1219 = vmatprep.subr.mxu0 0.0
    %1220 = vmatpush1.xpose.msra.mxu0 %v1217
    %1221 = vmatprep.subr.mxu0 0.0
    %1222 = vmatpush1.xpose.msra.mxu0 0.0
    %1223 = vmatprep.subr.mxu0 0.0
    %1224 = vmatpush1.xpose.msra.mxu0 0.0
    %1225 = vmatprep.subr.mxu0 0.0
    %1226 = vmatpush1.xpose.msra.mxu0 0.0
    %1227 = vmatprep.subr.mxu0 0.0
    %1228 = vmatpush1.xpose.msra.mxu0 0.0
    %1229 = vmatprep.subr.mxu0 0.0
    %1230 = vmatpush1.xpose.msra.mxu0 0.0
    %1231 = vmatprep.subr.mxu0 0.0
    %1232 = vmatpush1.xpose.msra.mxu0 0.0
    %1233 = vmatprep.subr.mxu0 0.0
    %1234 = vmatpush1.xpose.msra.mxu0 0.0
    %1235 = vmatprep.subr.mxu0 0.0
    %1236 = vmatpush1.xpose.msra.mxu0 0.0
    %1237 = vmatprep.subr.mxu0 0.0
    %1238 = vmatpush1.xpose.msra.mxu0 0.0
    %1239 = vmatprep.subr.mxu0 0.0
    %1240 = vmatpush1.xpose.msra.mxu0 0.0
    %1241 = vmatprep.subr.mxu0 0.0
    %1242 = vmatpush1.xpose.msra.mxu0 0.0
    %1243 = vmatprep.subr.mxu0 0.0
    %1244 = vmatpush1.xpose.msra.mxu0 0.0
    %1245 = vmatprep.subr.mxu0 0.0
    %1246 = vmatpush1.xpose.msra.mxu0 0.0
    %1247 = vmatprep.subr.mxu0 0.0
    %1248 = vmatpush1.xpose.msra.mxu0 0.0
    %1249 = vmatprep.subr.mxu0 0.0
    %1250 = vmatpush1.xpose.msra.mxu0 0.0
    %1251 = vmatprep.subr.mxu0 0.0
    %1252 = vmatpush1.xpose.msra.mxu0 0.0
    %1253 = vmatprep.subr.mxu0 0.0
    %1254 = vmatpush1.xpose.msra.mxu0 0.0
    %1255 = vmatprep.subr.mxu0 0.0
    %1256 = vmatpush1.xpose.msra.mxu0 0.0
    %1257 = vmatprep.subr.mxu0 0.0
    %1258 = vmatpush1.xpose.msra.mxu0 0.0
    %1259 = vmatprep.subr.mxu0 0.0
    %1260 = vmatpush1.xpose.msra.mxu0 0.0
    %1261 = vmatprep.subr.mxu0 0.0
    %1262 = vmatpush1.xpose.msra.mxu0 0.0
    %1263 = vmatprep.subr.mxu0 0.0
    %1264 = vmatpush1.xpose.msra.mxu0 0.0
    %1265 = vmatprep.subr.mxu0 0.0
    %1266 = vmatpush1.xpose.msra.mxu0 0.0
    %1267 = vmatprep.subr.mxu0 0.0
    %1268 = vmatpush1.xpose.msra.mxu0 0.0
    %1269 = vmatprep.subr.mxu0 0.0
    %1270 = vmatpush1.xpose.msra.mxu0 0.0
    %1271 = vmatprep.subr.mxu0 0.0
    %1272 = vmatpush1.xpose.msra.mxu0 0.0
    %1273 = vmatprep.subr.mxu0 0.0
    %1274 = vmatpush1.xpose.msra.mxu0 0.0
    %1275 = vmatprep.subr.mxu0 0.0
    %1276 = vmatpush1.xpose.msra.mxu0 0.0
    %1277 = vmatprep.subr.mxu0 0.0
    %1278 = vmatpush1.xpose.msra.mxu0 0.0
    %1279 = vmatprep.subr.mxu0 0.0
    %1280 = vmatpush1.xpose.msra.mxu0 0.0
    %1281 = vmatprep.subr.mxu0 0.0
    %1282 = vmatpush1.xpose.msra.mxu0 0.0
    %1283 = vmatprep.mubr.f32.mxu0 0.0
    %1284 = vmatmul.mubr.f32.gmra.mrb[0].mxu0 %v1215
    %v1285 = vpop.f32.mrb[0].mxu0
    %v1286 = vadd.f32 0.0, %v1285
    %v1287 = vpop.f32.mrb[0].mxu0
    %1288 = vdwg.mxu0
    %v1289 = vmul.f32 %v1208, 0.35355338
    %v1290 = vmul.f32 %v1286, 0.35355338
    %v1291 = vsel %vm141, %v1289, -inf
    %1292 = vmax.xlane.f32.xlu0 %v1291
    %v1293 = vpop.xlane.xlu0 %1292
    %v1294 = vsel %vm141, %v1290, -inf
    %1295 = vmax.xlane.f32.xlu0 %v1294
    %v1296 = vpop.xlane.xlu0 %1295
    %v1297 = vsub.f32 %v1289, %v1293
    %v1298 = vsub.f32 %v1290, %v1296
    %v1299 = vmul.f32 %v1297, 1.442695
    %v1300 = vpow.pop %v1299
    %v1301 = vmul.f32 %v1298, 1.442695
    %v1302 = vpow.pop %v1301
    %v1303 = vsel %vm141, %v1300, 0.0
    %1304 = vadd.xlane.f32.xlu0 %v1303
    %v1305 = vpop.xlane.xlu0 %1304
    %v1306 = vsel %vm141, %v1302, 0.0
    %1307 = vadd.xlane.f32.xlu0 %v1306
    %v1308 = vpop.xlane.xlu0 %1307
    %1309 = vrot.lane.b32.xlu0 %v130, 40
    %v1310 = vpop.permute.xlu0 %1309
    %v1313 = vsel %vm141, %v1300, 0
    %1315 = vmatprep.subr.mxu0 0.0
    %1316 = vmatpush1.msra.mxu0 %v1310
    %1317 = vmatprep.subr.mxu0 0.0
    %1318 = vmatpush1.msra.mxu0 0.0
    %1319 = vmatprep.subr.mxu0 0.0
    %1320 = vmatpush1.msra.mxu0 0.0
    %1321 = vmatprep.subr.mxu0 0.0
    %1322 = vmatpush1.msra.mxu0 0.0
    %1323 = vmatprep.subr.mxu0 0.0
    %1324 = vmatpush1.msra.mxu0 0.0
    %1325 = vmatprep.subr.mxu0 0.0
    %1326 = vmatpush1.msra.mxu0 0.0
    %1327 = vmatprep.subr.mxu0 0.0
    %1328 = vmatpush1.msra.mxu0 0.0
    %1329 = vmatprep.subr.mxu0 0.0
    %1330 = vmatpush1.msra.mxu0 0.0
    %1331 = vmatprep.subr.mxu0 0.0
    %1332 = vmatpush1.msra.mxu0 0.0
    %1333 = vmatprep.subr.mxu0 0.0
    %1334 = vmatpush1.msra.mxu0 0.0
    %1335 = vmatprep.subr.mxu0 0.0
    %1336 = vmatpush1.msra.mxu0 0.0
    %1337 = vmatprep.subr.mxu0 0.0
    %1338 = vmatpush1.msra.mxu0 0.0
    %1339 = vmatprep.subr.mxu0 0.0
    %1340 = vmatpush1.msra.mxu0 0.0
    %1341 = vmatprep.subr.mxu0 0.0
    %1342 = vmatpush1.msra.mxu0 0.0
    %1343 = vmatprep.subr.mxu0 0.0
    %1344 = vmatpush1.msra.mxu0 0.0
    %1345 = vmatprep.subr.mxu0 0.0
    %1346 = vmatpush1.msra.mxu0 0.0
    %1347 = vmatprep.subr.mxu0 0.0
    %1348 = vmatpush1.msra.mxu0 0.0
    %1349 = vmatprep.subr.mxu0 0.0
    %1350 = vmatpush1.msra.mxu0 0.0
    %1351 = vmatprep.subr.mxu0 0.0
    %1352 = vmatpush1.msra.mxu0 0.0
    %1353 = vmatprep.subr.mxu0 0.0
    %1354 = vmatpush1.msra.mxu0 0.0
    %1355 = vmatprep.subr.mxu0 0.0
    %1356 = vmatpush1.msra.mxu0 0.0
    %1357 = vmatprep.subr.mxu0 0.0
    %1358 = vmatpush1.msra.mxu0 0.0
    %1359 = vmatprep.subr.mxu0 0.0
    %1360 = vmatpush1.msra.mxu0 0.0
    %1361 = vmatprep.subr.mxu0 0.0
    %1362 = vmatpush1.msra.mxu0 0.0
    %1363 = vmatprep.subr.mxu0 0.0
    %1364 = vmatpush1.msra.mxu0 0.0
    %1365 = vmatprep.subr.mxu0 0.0
    %1366 = vmatpush1.msra.mxu0 0.0
    %1367 = vmatprep.subr.mxu0 0.0
    %1368 = vmatpush1.msra.mxu0 0.0
    %1369 = vmatprep.subr.mxu0 0.0
    %1370 = vmatpush1.msra.mxu0 0.0
    %1371 = vmatprep.subr.mxu0 0.0
    %1372 = vmatpush1.msra.mxu0 0.0
    %1373 = vmatprep.subr.mxu0 0.0
    %1374 = vmatpush1.msra.mxu0 0.0
    %1375 = vmatprep.subr.mxu0 0.0
    %1376 = vmatpush1.msra.mxu0 0.0
    %1377 = vmatprep.subr.mxu0 0.0
    %1378 = vmatpush1.msra.mxu0 0.0
    %1379 = vmatprep.mubr.f32.mxu0 0.0
    %1380 = vmatmul.mubr.f32.gmra.mrb[0].mxu0 %v1313
    %v1381 = vpop.f32.mrb[0].mxu0
    %v1382 = vadd.f32 0.0, %v1381
    %v1383 = vpop.f32.mrb[0].mxu0
    %1384 = vdwg.mxu0
    %1385 = vrot.lane.b32.xlu0 %v135, 40
    %v1386 = vpop.permute.xlu0 %1385
    %v1389 = vsel %vm141, %v1302, 0
    %1391 = vmatprep.subr.mxu0 0.0
    %1392 = vmatpush1.msra.mxu0 %v1386
    %1393 = vmatprep.subr.mxu0 0.0
    %1394 = vmatpush1.msra.mxu0 0.0
    %1395 = vmatprep.subr.mxu0 0.0
    %1396 = vmatpush1.msra.mxu0 0.0
    %1397 = vmatprep.subr.mxu0 0.0
    %1398 = vmatpush1.msra.mxu0 0.0
    %1399 = vmatprep.subr.mxu0 0.0
    %1400 = vmatpush1.msra.mxu0 0.0
    %1401 = vmatprep.subr.mxu0 0.0
    %1402 = vmatpush1.msra.mxu0 0.0
    %1403 = vmatprep.subr.mxu0 0.0
    %1404 = vmatpush1.msra.mxu0 0.0
    %1405 = vmatprep.subr.mxu0 0.0
    %1406 = vmatpush1.msra.mxu0 0.0
    %1407 = vmatprep.subr.mxu0 0.0
    %1408 = vmatpush1.msra.mxu0 0.0
    %1409 = vmatprep.subr.mxu0 0.0
    %1410 = vmatpush1.msra.mxu0 0.0
    %1411 = vmatprep.subr.mxu0 0.0
    %1412 = vmatpush1.msra.mxu0 0.0
    %1413 = vmatprep.subr.mxu0 0.0
    %1414 = vmatpush1.msra.mxu0 0.0
    %1415 = vmatprep.subr.mxu0 0.0
    %1416 = vmatpush1.msra.mxu0 0.0
    %1417 = vmatprep.subr.mxu0 0.0
    %1418 = vmatpush1.msra.mxu0 0.0
    %1419 = vmatprep.subr.mxu0 0.0
    %1420 = vmatpush1.msra.mxu0 0.0
    %1421 = vmatprep.subr.mxu0 0.0
    %1422 = vmatpush1.msra.mxu0 0.0
    %1423 = vmatprep.subr.mxu0 0.0
    %1424 = vmatpush1.msra.mxu0 0.0
    %1425 = vmatprep.subr.mxu0 0.0
    %1426 = vmatpush1.msra.mxu0 0.0
    %1427 = vmatprep.subr.mxu0 0.0
    %1428 = vmatpush1.msra.mxu0 0.0
    %1429 = vmatprep.subr.mxu0 0.0
    %1430 = vmatpush1.msra.mxu0 0.0
    %1431 = vmatprep.subr.mxu0 0.0
    %1432 = vmatpush1.msra.mxu0 0.0
    %1433 = vmatprep.subr.mxu0 0.0
    %1434 = vmatpush1.msra.mxu0 0.0
    %1435 = vmatprep.subr.mxu0 0.0
    %1436 = vmatpush1.msra.mxu0 0.0
    %1437 = vmatprep.subr.mxu0 0.0
    %1438 = vmatpush1.msra.mxu0 0.0
    %1439 = vmatprep.subr.mxu0 0.0
    %1440 = vmatpush1.msra.mxu0 0.0
    %1441 = vmatprep.subr.mxu0 0.0
    %1442 = vmatpush1.msra.mxu0 0.0
    %1443 = vmatprep.subr.mxu0 0.0
    %1444 = vmatpush1.msra.mxu0 0.0
    %1445 = vmatprep.subr.mxu0 0.0
    %1446 = vmatpush1.msra.mxu0 0.0
    %1447 = vmatprep.subr.mxu0 0.0
    %1448 = vmatpush1.msra.mxu0 0.0
    %1449 = vmatprep.subr.mxu0 0.0
    %1450 = vmatpush1.msra.mxu0 0.0
    %1451 = vmatprep.subr.mxu0 0.0
    %1452 = vmatpush1.msra.mxu0 0.0
    %1453 = vmatprep.subr.mxu0 0.0
    %1454 = vmatpush1.msra.mxu0 0.0
    %1455 = vmatprep.mubr.f32.mxu0 0.0
    %1456 = vmatmul.mubr.f32.gmra.mrb[0].mxu0 %v1389
    %v1457 = vpop.f32.mrb[0].mxu0
    %v1458 = vadd.f32 0.0, %v1457
    %v1459 = vpop.f32.mrb[0].mxu0
    %1460 = vdwg.mxu0
    %v1461 = vrcp.pop %v1305
    %v1462 = vrcp.pop %v1308
    %v1463 = vmul.f32 %v1382, %v1461
    %v1464 = vmul.f32 %v1458, %v1462
    %1467 = vrot.lane.b32.xlu0 %v799, 8
    %v1468 = vpop.permute.xlu0 %1467
    %1469 = vrot.lane.b32.xlu0 %v800, 8
    %v1470 = vpop.permute.xlu0 %1469
    %1475 = vrot.lane.b32.xlu0 %v1131, 16
    %v1476 = vpop.permute.xlu0 %1475
    %1477 = vrot.lane.b32.xlu0 %v1132, 16
    %v1478 = vpop.permute.xlu0 %1477
    %1483 = vrot.lane.b32.xlu0 %v1463, 24
    %v1484 = vpop.permute.xlu0 %1483
    %1485 = vrot.lane.b32.xlu0 %v1464, 24
    %v1486 = vpop.permute.xlu0 %1485
    %v1489 = vsel %vm141, %v467, %v1468
    %v1490 = vsel %vm141, %v468, %v1470
    %vm1491 = vcmask 130048
    %v1492 = vsel %vm1491, %v1489, %v1476
    %v1493 = vsel %vm1491, %v1490, %v1478
    %vm1494 = vcmask 195584
    %v1495 = vsel %vm1494, %v1492, %v1484
    %v1496 = vsel %vm1494, %v1493, %v1486
    %1497 = vst.msk [vmem:[#allocation7] sm:$0xff] %vm56, %v1495
    %1498 = vst.msk [vmem:[#allocation7 + $0x8] sm:$0xff] %vm56, %v1496
    // Predicated region
    $region22: #{tpu_custom_call.1} parent=1 // pred_check
      _
    $region23: #{tpu_custom_call.1} parent=1 // pred_check_branch
      %1500 = sbr.rel (0) target = $region25
    $region24: #{tpu_custom_call.1} parent=1 // pred_region
      %s1502 = ssub.s32 256, 256
      %1503 = vsyncadd [#allocation4], %s1502
      %s1504 = sshll.u32 [#allocation7], 4
      %s1505 = int_to_ptr.vmem [resolvable:$true] %s1504
      %1510 = dma.vmem_to_hbm [thread:$0]  %s1505, 256, %s3, [#allocation4], 128, 128, 8
    $region25: #{tpu_custom_call.1} parent=1 // pred_fallthru
      _
    // Predicated region
    $region26: #{tpu_custom_call.1} parent=1 // pred_check
      _
    $region27: #{tpu_custom_call.1} parent=1 // pred_check_branch
      %1512 = sbr.rel (0) target = $region29
    $region28: #{tpu_custom_call.1} parent=1 // pred_region
      %1513 = dma.done [#allocation4], 256
    $region29: #{tpu_custom_call.1} parent=1 // pred_fallthru
      _
    %1514 = vsyncpa [#allocation3], 1
    %1515 = vsyncpa [#allocation6], 1
    %1516 = vsyncpa [#allocation4], 1

</llo_original>
